<compile_context>
chip_gen: v5e
topology: v5e:2x2
jax: 0.10.0
libtpu: 0.0.40
codegen_flags: <defaults>
</compile_context>

<pallas_src>
import functools

import jax
import jax.numpy as jnp
import numpy as np
from jax.experimental import pallas as pl
from jax.experimental.pallas import tpu as pltpu


def _make_kernel(heads: int, b: int, t: int, emb: int):
    e = emb // heads
    bh = b * heads
    # torch divides q and k each by e**(1/4); fold into ONE multiply on scores.
    inv_scale = float(e) ** -0.5

    def kernel(x_ref, mask_ref, wq_ref, wk_ref, wv_ref, wu_ref, bu_ref, o_ref):
        x = x_ref[...]                                    # (B, T, E) f32

        # Fuse (batch, head) into one leading batch axis.  Only leading dims are
        # broadcast / reshaped (last two dims untouched) -> cheap replication,
        # never a sublane/lane relayout.
        x_bh = jnp.broadcast_to(x[:, None], (b, heads, t, emb)).reshape(bh, t, emb)

        def per_bh(w_ref):                                # (H, e, E) -> (B*H, e, E)
            w = w_ref[...]
            return jnp.broadcast_to(w[None], (b, heads, e, emb)).reshape(bh, e, emb)

        # Q/K/V projections for every (batch, head) as three batched MXU ops.
        q = jnp.einsum("bti,bdi->btd", x_bh, per_bh(wq_ref),
                       preferred_element_type=jnp.float32)        # (BH, T, e)
        k = jnp.einsum("bti,bdi->btd", x_bh, per_bh(wk_ref),
                       preferred_element_type=jnp.float32)
        v = jnp.einsum("bti,bdi->btd", x_bh, per_bh(wv_ref),
                       preferred_element_type=jnp.float32)

        # All head/batch scores in one batched matmul; scale folded into a single
        # multiply; masked_fill applied once to the whole slab.
        scores = jnp.einsum("btd,bsd->bts", q, k,
                            preferred_element_type=jnp.float32)   # (BH, T, T)
        scores = jnp.where(mask_ref[...] == 0, jnp.float32(-1e9),
                           scores * jnp.float32(inv_scale))

        # One numerically-stable softmax over the whole slab; denominator via the
        # EUP reciprocal instead of a vector divide.
        scores = scores - jnp.max(scores, axis=-1, keepdims=True)
        p = jnp.exp(scores)
        p = p * pl.reciprocal(jnp.sum(p, axis=-1, keepdims=True), approx=True)

        out = jnp.einsum("bts,bsd->btd", p, v,
                         preferred_element_type=jnp.float32)      # (BH, T, e)

        # unifyheads: per-head projection back to E, sum over heads, add bias.
        y_bh = jnp.einsum("btd,bdo->bto", out, per_bh(wu_ref),
                          preferred_element_type=jnp.float32)     # (BH, T, E)
        y = jnp.sum(y_bh.reshape(b, heads, t, emb), axis=1) + bu_ref[...]
        o_ref[...] = y.astype(o_ref.dtype)

    return kernel


@functools.partial(jax.jit, static_argnames=("heads",))
def self_attention_for_large(x, mask, wq, wk, wv, wu, bu, *, heads):
    """x: (B,T,E) f32; mask: (T,T) int32 (1=keep, 0=mask -> -1e9);
    wq/wk/wv/wu: (E,E) PyTorch nn.Linear weights (out_features, in_features);
    bu: (E,) unifyheads bias."""
    b, t, emb = x.shape
    e = emb // heads

    # Head-wise weight views (done once, outside the kernel):
    #   q/k/v : q[:, h*e:(h+1)*e] = x @ W[h*e:(h+1)*e, :].T   -> (H, e, E)
    #   unify : y = sum_h out_h @ Wu.T[h*e:(h+1)*e, :]        -> (H, e, E)
    wq_h = wq.reshape(heads, e, emb)
    wk_h = wk.reshape(heads, e, emb)
    wv_h = wv.reshape(heads, e, emb)
    wu_h = wu.T.reshape(heads, e, emb)
    bu2 = bu.reshape(1, emb)

    kernel = _make_kernel(heads, b, t, emb)

    # Single grid step; full-array blocks satisfy the (8,128) rule via the
    # "equal to full array dims" clause.
    grid_spec = pltpu.PrefetchScalarGridSpec(
        num_scalar_prefetch=0,
        grid=(1,),
        in_specs=[
            pl.BlockSpec((b, t, emb), lambda i: (0, 0, 0)),        # x
            pl.BlockSpec((t, t), lambda i: (0, 0)),                # mask
            pl.BlockSpec((heads, e, emb), lambda i: (0, 0, 0)),    # Wq per head
            pl.BlockSpec((heads, e, emb), lambda i: (0, 0, 0)),    # Wk per head
            pl.BlockSpec((heads, e, emb), lambda i: (0, 0, 0)),    # Wv per head
            pl.BlockSpec((heads, e, emb), lambda i: (0, 0, 0)),    # Wu per head
            pl.BlockSpec((1, emb), lambda i: (0, 0)),              # unify bias
        ],
        out_specs=pl.BlockSpec((b, t, emb), lambda i: (0, 0, 0)),
    )
    # TODO(synk): for genuinely large T/E, tile T and the contraction dims with a
    # ("parallel","parallel","arbitrary") grid over (batch*heads, q-block, k-block),
    # cast matmul operands to bf16, and set vmem_limit_bytes explicitly.
    return pl.pallas_call(
        kernel,
        out_shape=jax.ShapeDtypeStruct((b, t, emb), x.dtype),
        grid_spec=grid_spec,
        compiler_params=pltpu.CompilerParams(dimension_semantics=("arbitrary",)),
    )(x, mask, wq_h, wk_h, wv_h, wu_h, bu2)


def reference(x, mask, wq, wk, wv, wu, bu, heads):
    """Pure-JAX reimplementation of the PyTorch forward for verification."""
    b, t, emb = x.shape
    e = emb // heads

    def split_heads(y):  # (B,T,E) -> (B*H, T, e)
        return y.reshape(b, t, heads, e).transpose(0, 2, 1, 3).reshape(b * heads, t, e)

    q = split_heads(x @ wq.T) / e ** 0.25
    k = split_heads(x @ wk.T) / e ** 0.25
    v = split_heads(x @ wv.T)
    dot = jnp.einsum("bte,bse->bts", q, k)
    dot = jnp.where(mask[None, :, :] == 0, -1e9, dot)
    dot = jax.nn.softmax(dot, axis=2)
    out = jnp.einsum("bts,bse->bte", dot, v)
    out = out.reshape(b, heads, t, e).transpose(0, 2, 1, 3).reshape(b, t, emb)
    return out @ wu.T + bu.reshape(1, 1, emb)


if __name__ == "__main__":
    b, t, emb, heads = 2, 8, 32, 8

    key = jax.random.PRNGKey(0)
    kx, kq, kk, kv, ku, kb, km = jax.random.split(key, 7)

    x = jax.random.normal(kx, (b, t, emb), dtype=jnp.float32)
    # PyTorch nn.Linear weights, (out_features, in_features).
    Wq = jax.random.normal(kq, (emb, emb), dtype=jnp.float32) * 0.1
    Wk = jax.random.normal(kk, (emb, emb), dtype=jnp.float32) * 0.1
    Wv = jax.random.normal(kv, (emb, emb), dtype=jnp.float32) * 0.1
    Wu = jax.random.normal(ku, (emb, emb), dtype=jnp.float32) * 0.1
    bu = jax.random.normal(kb, (emb,), dtype=jnp.float32) * 0.1
    # attention mask (T, T): 1 = keep, 0 = masked out (-1e9)
    mask = (jax.random.uniform(km, (t, t)) > 0.2).astype(jnp.int32)

    out = self_attention_for_large(x, mask, Wq, Wk, Wv, Wu, bu, heads=heads)
    jax.block_until_ready(out)

    ref = reference(x, mask, Wq, Wk, Wv, Wu, bu, heads)
    np.testing.assert_allclose(np.asarray(out), np.asarray(ref), rtol=2e-2, atol=2e-2)

    print("KERNEL_OK")
</pallas_src>

<mosaic_0001>
module attributes {stable_mosaic.version = 11 : i64} {
  func.func @kernel(%arg0: i32, %arg1: memref<2x8x32xf32, #tpu.memory_space<vmem>>, %arg2: memref<8x8xi32, #tpu.memory_space<vmem>>, %arg3: memref<8x4x32xf32, #tpu.memory_space<vmem>>, %arg4: memref<8x4x32xf32, #tpu.memory_space<vmem>>, %arg5: memref<8x4x32xf32, #tpu.memory_space<vmem>>, %arg6: memref<8x4x32xf32, #tpu.memory_space<vmem>>, %arg7: memref<1x32xf32, #tpu.memory_space<vmem>>, %arg8: memref<2x8x32xf32, #tpu.memory_space<vmem>>) attributes {dimension_semantics = [#tpu.dimension_semantics<arbitrary>], iteration_bounds = array<i64: 1>, scalar_prefetch = 0 : i64, scratch_operands = 0 : i64, tpu.core_type = #tpu.core_type<tc>, window_params = [{pipeline_mode = #tpu.pipeline_mode<synchronous>, transform_indices = @transform_0, window_bounds = array<i64: 2, 8, 32>}, {pipeline_mode = #tpu.pipeline_mode<synchronous>, transform_indices = @transform_1, window_bounds = array<i64: 8, 8>}, {pipeline_mode = #tpu.pipeline_mode<synchronous>, transform_indices = @transform_2, window_bounds = array<i64: 8, 4, 32>}, {pipeline_mode = #tpu.pipeline_mode<synchronous>, transform_indices = @transform_3, window_bounds = array<i64: 8, 4, 32>}, {pipeline_mode = #tpu.pipeline_mode<synchronous>, transform_indices = @transform_4, window_bounds = array<i64: 8, 4, 32>}, {pipeline_mode = #tpu.pipeline_mode<synchronous>, transform_indices = @transform_5, window_bounds = array<i64: 8, 4, 32>}, {pipeline_mode = #tpu.pipeline_mode<synchronous>, transform_indices = @transform_6, window_bounds = array<i64: 1, 32>}, {pipeline_mode = #tpu.pipeline_mode<synchronous>, transform_indices = @transform_7, window_bounds = array<i64: 2, 8, 32>}]} {
    %c0 = arith.constant 0 : index
    %c0_0 = arith.constant 0 : index
    %c0_1 = arith.constant 0 : index
    %0 = vector.load %arg1[%c0, %c0_0, %c0_1] : memref<2x8x32xf32, #tpu.memory_space<vmem>>, vector<2x8x32xf32>
    %1 = vector.shape_cast %0 : vector<2x8x32xf32> to vector<2x1x8x32xf32>
    %2 = vector.shape_cast %1 : vector<2x1x8x32xf32> to vector<2x1x8x32xf32>
    %3 = vector.broadcast %2 : vector<2x1x8x32xf32> to vector<2x8x8x32xf32>
    %4 = vector.shape_cast %3 : vector<2x8x8x32xf32> to vector<16x8x32xf32>
    %c0_2 = arith.constant 0 : index
    %c0_3 = arith.constant 0 : index
    %c0_4 = arith.constant 0 : index
    %5 = vector.load %arg3[%c0_2, %c0_3, %c0_4] : memref<8x4x32xf32, #tpu.memory_space<vmem>>, vector<8x4x32xf32>
    %6 = vector.shape_cast %5 : vector<8x4x32xf32> to vector<1x8x4x32xf32>
    %7 = vector.shape_cast %6 : vector<1x8x4x32xf32> to vector<1x8x4x32xf32>
    %8 = vector.broadcast %7 : vector<1x8x4x32xf32> to vector<2x8x4x32xf32>
    %9 = vector.shape_cast %8 : vector<2x8x4x32xf32> to vector<16x4x32xf32>
    "tpu.trace_start"() <{level = 10 : i32, message = "bti,bdi->btd"}> : () -> ()
    %cst = arith.constant dense<0.000000e+00> : vector<16x8x4xf32>
    %10 = tpu.matmul %4, %9, %cst {dimension_numbers = #tpu.dot_dimension_numbers<[2], [2], [1], [1], [0, 0, 0, 1, 1, 1], [0], [0]>} : vector<16x8x32xf32>, vector<16x4x32xf32>, vector<16x8x4xf32> -> vector<16x8x4xf32>
    "tpu.trace_stop"() : () -> ()
    %c0_5 = arith.constant 0 : index
    %c0_6 = arith.constant 0 : index
    %c0_7 = arith.constant 0 : index
    %11 = vector.load %arg4[%c0_5, %c0_6, %c0_7] : memref<8x4x32xf32, #tpu.memory_space<vmem>>, vector<8x4x32xf32>
    %12 = vector.shape_cast %11 : vector<8x4x32xf32> to vector<1x8x4x32xf32>
    %13 = vector.shape_cast %12 : vector<1x8x4x32xf32> to vector<1x8x4x32xf32>
    %14 = vector.broadcast %13 : vector<1x8x4x32xf32> to vector<2x8x4x32xf32>
    %15 = vector.shape_cast %14 : vector<2x8x4x32xf32> to vector<16x4x32xf32>
    "tpu.trace_start"() <{level = 10 : i32, message = "bti,bdi->btd"}> : () -> ()
    %cst_8 = arith.constant dense<0.000000e+00> : vector<16x8x4xf32>
    %16 = tpu.matmul %4, %15, %cst_8 {dimension_numbers = #tpu.dot_dimension_numbers<[2], [2], [1], [1], [0, 0, 0, 1, 1, 1], [0], [0]>} : vector<16x8x32xf32>, vector<16x4x32xf32>, vector<16x8x4xf32> -> vector<16x8x4xf32>
    "tpu.trace_stop"() : () -> ()
    %c0_9 = arith.constant 0 : index
    %c0_10 = arith.constant 0 : index
    %c0_11 = arith.constant 0 : index
    %17 = vector.load %arg5[%c0_9, %c0_10, %c0_11] : memref<8x4x32xf32, #tpu.memory_space<vmem>>, vector<8x4x32xf32>
    %18 = vector.shape_cast %17 : vector<8x4x32xf32> to vector<1x8x4x32xf32>
    %19 = vector.shape_cast %18 : vector<1x8x4x32xf32> to vector<1x8x4x32xf32>
    %20 = vector.broadcast %19 : vector<1x8x4x32xf32> to vector<2x8x4x32xf32>
    %21 = vector.shape_cast %20 : vector<2x8x4x32xf32> to vector<16x4x32xf32>
    "tpu.trace_start"() <{level = 10 : i32, message = "bti,bdi->btd"}> : () -> ()
    %cst_12 = arith.constant dense<0.000000e+00> : vector<16x8x4xf32>
    %22 = tpu.matmul %4, %21, %cst_12 {dimension_numbers = #tpu.dot_dimension_numbers<[2], [2], [1], [1], [0, 0, 0, 1, 1, 1], [0], [0]>} : vector<16x8x32xf32>, vector<16x4x32xf32>, vector<16x8x4xf32> -> vector<16x8x4xf32>
    "tpu.trace_stop"() : () -> ()
    "tpu.trace_start"() <{level = 10 : i32, message = "btd,bsd->bts"}> : () -> ()
    %cst_13 = arith.constant dense<0.000000e+00> : vector<16x8x8xf32>
    %23 = tpu.matmul %10, %16, %cst_13 {dimension_numbers = #tpu.dot_dimension_numbers<[2], [2], [1], [1], [0, 0, 0, 1, 1, 1], [0], [0]>} : vector<16x8x4xf32>, vector<16x8x4xf32>, vector<16x8x8xf32> -> vector<16x8x8xf32>
    "tpu.trace_stop"() : () -> ()
    %c0_14 = arith.constant 0 : index
    %c0_15 = arith.constant 0 : index
    %24 = vector.load %arg2[%c0_14, %c0_15] : memref<8x8xi32, #tpu.memory_space<vmem>>, vector<8x8xi32>
    %c0_i32 = arith.constant 0 : i32
    %25 = vector.broadcast %c0_i32 : i32 to vector<8x8xi32>
    %26 = arith.cmpi eq, %24, %25 : vector<8x8xi32>
    %cst_16 = arith.constant 5.000000e-01 : f32
    %27 = vector.broadcast %cst_16 : f32 to vector<16x8x8xf32>
    %28 = arith.mulf %23, %27 : vector<16x8x8xf32>
    %cst_17 = arith.constant -1.000000e+09 : f32
    %29 = vector.shape_cast %26 : vector<8x8xi1> to vector<1x8x8xi1>
    %30 = vector.broadcast %29 : vector<1x8x8xi1> to vector<16x8x8xi1>
    %31 = vector.broadcast %cst_17 : f32 to vector<16x8x8xf32>
    %32 = arith.select %30, %31, %28 : vector<16x8x8xi1>, vector<16x8x8xf32>
    %cst_18 = arith.constant dense<0xFF800000> : vector<16x8xf32>
    %33 = vector.multi_reduction <maximumf>, %32, %cst_18 [2] : vector<16x8x8xf32> to vector<16x8xf32>
    %34 = vector.shape_cast %33 : vector<16x8xf32> to vector<16x8x1xf32>
    %35 = vector.broadcast %34 : vector<16x8x1xf32> to vector<16x8x8xf32>
    %36 = arith.subf %32, %35 : vector<16x8x8xf32>
    %37 = math.exp %36 : vector<16x8x8xf32>
    %cst_19 = arith.constant dense<0.000000e+00> : vector<16x8xf32>
    %38 = vector.multi_reduction <add>, %37, %cst_19 [2] : vector<16x8x8xf32> to vector<16x8xf32>
    %39 = vector.shape_cast %38 : vector<16x8xf32> to vector<16x8x1xf32>
    %40 = tpu.reciprocal %39 {approx = true} : vector<16x8x1xf32> -> vector<16x8x1xf32>
    %41 = vector.broadcast %40 : vector<16x8x1xf32> to vector<16x8x8xf32>
    %42 = arith.mulf %37, %41 : vector<16x8x8xf32>
    "tpu.trace_start"() <{level = 10 : i32, message = "bts,bsd->btd"}> : () -> ()
    %cst_20 = arith.constant dense<0.000000e+00> : vector<16x8x4xf32>
    %43 = tpu.matmul %42, %22, %cst_20 {dimension_numbers = #tpu.dot_dimension_numbers<[2], [1], [1], [2], [0, 0, 0, 1, 1, 2], [0], [0]>} : vector<16x8x8xf32>, vector<16x8x4xf32>, vector<16x8x4xf32> -> vector<16x8x4xf32>
    "tpu.trace_stop"() : () -> ()
    %c0_21 = arith.constant 0 : index
    %c0_22 = arith.constant 0 : index
    %c0_23 = arith.constant 0 : index
    %44 = vector.load %arg6[%c0_21, %c0_22, %c0_23] : memref<8x4x32xf32, #tpu.memory_space<vmem>>, vector<8x4x32xf32>
    %45 = vector.shape_cast %44 : vector<8x4x32xf32> to vector<1x8x4x32xf32>
    %46 = vector.shape_cast %45 : vector<1x8x4x32xf32> to vector<1x8x4x32xf32>
    %47 = vector.broadcast %46 : vector<1x8x4x32xf32> to vector<2x8x4x32xf32>
    %48 = vector.shape_cast %47 : vector<2x8x4x32xf32> to vector<16x4x32xf32>
    "tpu.trace_start"() <{level = 10 : i32, message = "btd,bdo->bto"}> : () -> ()
    %cst_24 = arith.constant dense<0.000000e+00> : vector<16x8x32xf32>
    %49 = tpu.matmul %43, %48, %cst_24 {dimension_numbers = #tpu.dot_dimension_numbers<[2], [1], [1], [2], [0, 0, 0, 1, 1, 2], [0], [0]>} : vector<16x8x4xf32>, vector<16x4x32xf32>, vector<16x8x32xf32> -> vector<16x8x32xf32>
    "tpu.trace_stop"() : () -> ()
    %50 = vector.shape_cast %49 : vector<16x8x32xf32> to vector<2x8x8x32xf32>
    %cst_25 = arith.constant dense<0.000000e+00> : vector<2x8x32xf32>
    %51 = vector.multi_reduction <add>, %50, %cst_25 [1] : vector<2x8x8x32xf32> to vector<2x8x32xf32>
    %c0_26 = arith.constant 0 : index
    %c0_27 = arith.constant 0 : index
    %52 = vector.load %arg7[%c0_26, %c0_27] : memref<1x32xf32, #tpu.memory_space<vmem>>, vector<1x32xf32>
    %53 = vector.shape_cast %52 : vector<1x32xf32> to vector<1x1x32xf32>
    %54 = vector.broadcast %53 : vector<1x1x32xf32> to vector<2x8x32xf32>
    %55 = arith.addf %51, %54 : vector<2x8x32xf32>
    %c0_28 = arith.constant 0 : index
    %c0_29 = arith.constant 0 : index
    %c0_30 = arith.constant 0 : index
    %56 = vector.load %arg8[%c0_28, %c0_29, %c0_30] : memref<2x8x32xf32, #tpu.memory_space<vmem>>, vector<2x8x32xf32>
    tpu.vector_store %arg8[%c0_28, %c0_29, %c0_30], %55 {strides = array<i32>} : memref<2x8x32xf32, #tpu.memory_space<vmem>>, vector<2x8x32xf32>,
    return
  }
  func.func @transform_0(%arg0: i32) -> (i32, i32, i32) {
    %c0_i32 = arith.constant 0 : i32
    %c0_i32_0 = arith.constant 0 : i32
    %c0_i32_1 = arith.constant 0 : i32
    %c0_i32_2 = arith.constant 0 : i32
    return %c0_i32, %c0_i32_0, %c0_i32_1 : i32, i32, i32
  }
  func.func @transform_1(%arg0: i32) -> (i32, i32) {
    %c0_i32 = arith.constant 0 : i32
    %c0_i32_0 = arith.constant 0 : i32
    %c0_i32_1 = arith.constant 0 : i32
    return %c0_i32, %c0_i32_0 : i32, i32
  }
  func.func @transform_2(%arg0: i32) -> (i32, i32, i32) {
    %c0_i32 = arith.constant 0 : i32
    %c0_i32_0 = arith.constant 0 : i32
    %c0_i32_1 = arith.constant 0 : i32
    %c0_i32_2 = arith.constant 0 : i32
    return %c0_i32, %c0_i32_0, %c0_i32_1 : i32, i32, i32
  }
  func.func @transform_3(%arg0: i32) -> (i32, i32, i32) {
    %c0_i32 = arith.constant 0 : i32
    %c0_i32_0 = arith.constant 0 : i32
    %c0_i32_1 = arith.constant 0 : i32
    %c0_i32_2 = arith.constant 0 : i32
    return %c0_i32, %c0_i32_0, %c0_i32_1 : i32, i32, i32
  }
  func.func @transform_4(%arg0: i32) -> (i32, i32, i32) {
    %c0_i32 = arith.constant 0 : i32
    %c0_i32_0 = arith.constant 0 : i32
    %c0_i32_1 = arith.constant 0 : i32
    %c0_i32_2 = arith.constant 0 : i32
    return %c0_i32, %c0_i32_0, %c0_i32_1 : i32, i32, i32
  }
  func.func @transform_5(%arg0: i32) -> (i32, i32, i32) {
    %c0_i32 = arith.constant 0 : i32
    %c0_i32_0 = arith.constant 0 : i32
    %c0_i32_1 = arith.constant 0 : i32
    %c0_i32_2 = arith.constant 0 : i32
    return %c0_i32, %c0_i32_0, %c0_i32_1 : i32, i32, i32
  }
  func.func @transform_6(%arg0: i32) -> (i32, i32) {
    %c0_i32 = arith.constant 0 : i32
    %c0_i32_0 = arith.constant 0 : i32
    %c0_i32_1 = arith.constant 0 : i32
    return %c0_i32, %c0_i32_0 : i32, i32
  }
  func.func @transform_7(%arg0: i32) -> (i32, i32, i32) {
    %c0_i32 = arith.constant 0 : i32
    %c0_i32_0 = arith.constant 0 : i32
    %c0_i32_1 = arith.constant 0 : i32
    %c0_i32_2 = arith.constant 0 : i32
    return %c0_i32, %c0_i32_0, %c0_i32_1 : i32, i32, i32
  }
}

</mosaic_0001>

<llo_original>
// kernel: self_attention_for_large.1
$region0: #{self_attention_for_large.1}
  #allocation0 [shape = 'u32[]', space=smem, size = 0x4, offset = 0x4, fixed_abs, tag = 'smem constant byte address 0x4 - core index']
  #allocation1 [shape = 'u32[72,128]{1,0:T(1,128)}', space=vmem, size = 0x9000, scoped, tag = 'internal scratch']
  %s0 = inlined_call_operand.hbm [shape: f32[2,8,32], index: 0, kind: input, shape index: {}]
  %s1 = inlined_call_operand.hbm [shape: s32[8,8], index: 1, kind: input, shape index: {}]
  %s2 = inlined_call_operand.vmem [shape: f32[8,4,32], index: 2, kind: input, shape index: {}]
  %s3 = inlined_call_operand.vmem [shape: f32[8,4,32], index: 3, kind: input, shape index: {}]
  %s4 = inlined_call_operand.hbm [shape: f32[8,4,32], index: 4, kind: input, shape index: {}]
  %s5 = inlined_call_operand.vmem [shape: f32[8,4,32], index: 5, kind: input, shape index: {}]
  %s6 = inlined_call_operand.vmem [shape: f32[1,32], index: 6, kind: input, shape index: {}]
  %s7 = inlined_call_operand.hbm [shape: f32[2,8,32], index: 7, kind: output, shape index: {}]
  %s8 = sld [smem:[#allocation0]]
  $region50: #{self_attention_for_large.1} parent=0
    _
  %s10 = ssub.s32 1, %s8
  %s11 = scalar_select 0, %s10, %s8
  $region1: #{self_attention_for_large.1} parent=0
    #allocation2 [shape = 'u8[8192]{0}', space=vmem, size = 0x2000, scoped, tag = 'input window, operand 0, single buffered']
    #allocation3 [shape = 's32[1]{0}', space=sflag, size = 0x4, scoped, tag = 'scoped memory for self_attention_for_large.1']
    #allocation4 [shape = 's32[1]{0}', space=sflag, size = 0x4, scoped, tag = 'scoped memory for self_attention_for_large.1']
    #allocation5 [shape = 'u8[4096]{0}', space=vmem, size = 0x1000, scoped, tag = 'input window, operand 1, single buffered']
    #allocation6 [shape = 's32[1]{0}', space=sflag, size = 0x4, scoped, tag = 'scoped memory for self_attention_for_large.1']
    #allocation7 [shape = 'u8[16384]{0}', space=vmem, size = 0x4000, scoped, tag = 'input window, operand 4, single buffered']
    #allocation8 [shape = 'u8[8192]{0}', space=vmem, size = 0x2000, scoped, tag = 'output window, operand 0, single buffered']
    %12 = vsyncpa [#allocation3], 0
    %13 = vsyncpa [#allocation6], 0
    %14 = vsyncpa [#allocation4], 0
    // Predicated region
    $region2: #{self_attention_for_large.1} parent=1 // pred_check
      _
    $region3: #{self_attention_for_large.1} parent=1 // pred_check_branch
      %16 = sbr.rel (0) target = $region5
    $region4: #{self_attention_for_large.1} parent=1 // pred_region
      %18 = vsyncadd [#allocation3], 0
      %s19 = sshll.u32 %s0, 4
      %s20 = int_to_ptr.hbm [resolvable:$true] %s19
      %s21 = sshll.u32 [#allocation2], 4
      %s22 = int_to_ptr.vmem [resolvable:$true] %s21
      %27 = dma.hbm_to_vmem [thread:$0]  %s20, 256, %s22, [#allocation3], 128, 128, 8
    $region5: #{self_attention_for_large.1} parent=1 // pred_fallthru
      _
    // Predicated region
    $region6: #{self_attention_for_large.1} parent=1 // pred_check
      _
    $region7: #{self_attention_for_large.1} parent=1 // pred_check_branch
      %29 = sbr.rel (0) target = $region9
    $region8: #{self_attention_for_large.1} parent=1 // pred_region
      %31 = vsyncadd [#allocation6], 0
      %s33 = sshll.u32 %s1, 4
      %s34 = int_to_ptr.hbm [resolvable:$true] %s33
      %s35 = sshll.u32 [#allocation5], 4
      %s36 = int_to_ptr.vmem [resolvable:$true] %s35
      %38 = dma.hbm_to_vmem [thread:$0]  %s34, 128, %s36, [#allocation6]
    $region9: #{self_attention_for_large.1} parent=1 // pred_fallthru
      _
    // Predicated region
    $region10: #{self_attention_for_large.1} parent=1 // pred_check
      _
    $region11: #{self_attention_for_large.1} parent=1 // pred_check_branch
      %40 = sbr.rel (0) target = $region13
    $region12: #{self_attention_for_large.1} parent=1 // pred_region
      _
    $region13: #{self_attention_for_large.1} parent=1 // pred_fallthru
      _
    // Predicated region
    $region14: #{self_attention_for_large.1} parent=1 // pred_check
      _
    $region15: #{self_attention_for_large.1} parent=1 // pred_check_branch
      %42 = sbr.rel (0) target = $region17
    $region16: #{self_attention_for_large.1} parent=1 // pred_region
      _
    $region17: #{self_attention_for_large.1} parent=1 // pred_fallthru
      _
    // Predicated region
    $region18: #{self_attention_for_large.1} parent=1 // pred_check
      _
    $region19: #{self_attention_for_large.1} parent=1 // pred_check_branch
      %44 = sbr.rel (0) target = $region21
    $region20: #{self_attention_for_large.1} parent=1 // pred_region
      %46 = vsyncadd [#allocation6], 0
      %s47 = sshll.u32 %s4, 4
      %s48 = int_to_ptr.hbm [resolvable:$true] %s47
      %s49 = sshll.u32 [#allocation7], 4
      %s50 = int_to_ptr.vmem [resolvable:$true] %s49
      %55 = dma.hbm_to_vmem [thread:$0]  %s48, 512, %s50, [#allocation6], 64, 64, 4
    $region21: #{self_attention_for_large.1} parent=1 // pred_fallthru
      _
    // Predicated region
    $region22: #{self_attention_for_large.1} parent=1 // pred_check
      _
    $region23: #{self_attention_for_large.1} parent=1 // pred_check_branch
      %57 = sbr.rel (0) target = $region25
    $region24: #{self_attention_for_large.1} parent=1 // pred_region
      _
    $region25: #{self_attention_for_large.1} parent=1 // pred_fallthru
      _
    // Predicated region
    $region26: #{self_attention_for_large.1} parent=1 // pred_check
      _
    $region27: #{self_attention_for_large.1} parent=1 // pred_check_branch
      %59 = sbr.rel (0) target = $region29
    $region28: #{self_attention_for_large.1} parent=1 // pred_region
      _
    $region29: #{self_attention_for_large.1} parent=1 // pred_fallthru
      _
    // Predicated region
    $region30: #{self_attention_for_large.1} parent=1 // pred_check
      _
    $region31: #{self_attention_for_large.1} parent=1 // pred_check_branch
      %61 = sbr.rel (0) target = $region33
    $region32: #{self_attention_for_large.1} parent=1 // pred_region
      %63 = dma.done [#allocation3], 256
    $region33: #{self_attention_for_large.1} parent=1 // pred_fallthru
      _
    // Predicated region
    $region34: #{self_attention_for_large.1} parent=1 // pred_check
      _
    $region35: #{self_attention_for_large.1} parent=1 // pred_check_branch
      %65 = sbr.rel (0) target = $region37
    $region36: #{self_attention_for_large.1} parent=1 // pred_region
      %67 = dma.done [#allocation6], 128
    $region37: #{self_attention_for_large.1} parent=1 // pred_fallthru
      _
    // Predicated region
    $region38: #{self_attention_for_large.1} parent=1 // pred_check
      _
    $region39: #{self_attention_for_large.1} parent=1 // pred_check_branch
      %69 = sbr.rel (0) target = $region41
    $region40: #{self_attention_for_large.1} parent=1 // pred_region
      %71 = dma.done [#allocation6], 512
    $region41: #{self_attention_for_large.1} parent=1 // pred_fallthru
      _
    %v72 = vld [vmem:[#allocation2] sm:$0xff]
    %v73 = vld [vmem:[#allocation2 + $0x8] sm:$0xff]
    %v74 = vld [vmem:[%s2] sm:$0xf]
    %v75 = vld [vmem:[%s2 + $0x4] sm:$0xf]
    %v76 = vld [vmem:[%s2 + $0x8] sm:$0xf]
    %v77 = vld [vmem:[%s2 + $0xc] sm:$0xf]
    %v78 = vld [vmem:[%s2 + $0x10] sm:$0xf]
    %v79 = vld [vmem:[%s2 + $0x14] sm:$0xf]
    %v80 = vld [vmem:[%s2 + $0x18] sm:$0xf]
    %v81 = vld [vmem:[%s2 + $0x1c] sm:$0xf]
    %vm82 = vcmask 261120
    %v84 = vsel %vm82, %v72, 0
    %v87 = vsel %vm82, %v74, 0
    %89 = vmatpush.xpose.msra.mxu0 0.0
    %90 = vmatpush.xpose.msra.mxu0 0.0
    %91 = vmatpush.xpose.msra.mxu0 0.0
    %92 = vmatpush.xpose.msra.mxu0 0.0
    %93 = vmatpush.xpose.msra.mxu0 0.0
    %94 = vmatpush.xpose.msra.mxu0 0.0
    %95 = vmatpush.xpose.msra.mxu0 0.0
    %96 = vmatpush.xpose.msra.mxu0 0.0
    %97 = vmatpush.xpose.msra.mxu0 0.0
    %98 = vmatpush.xpose.msra.mxu0 0.0
    %99 = vmatpush.xpose.msra.mxu0 0.0
    %100 = vmatpush.xpose.msra.mxu0 0.0
    %101 = vmatpush.xpose.msra.mxu0 0.0
    %102 = vmatpush.xpose.msra.mxu0 0.0
    %103 = vmatpush.xpose.msra.mxu0 0.0
    %104 = vmatpush.xpose.msra.mxu0 %v87
    %105 = vmatmul.f32.gmra.mxu0 %v84
    %v106 = vpop.f32.mrf.mxu0
    %v107 = vadd.f32 0.0, %v106
    %108 = vdwg.mxu0
    %v110 = vsel %vm82, %v75, 0
    %112 = vmatpush.xpose.msra.mxu0 0.0
    %113 = vmatpush.xpose.msra.mxu0 0.0
    %114 = vmatpush.xpose.msra.mxu0 0.0
    %115 = vmatpush.xpose.msra.mxu0 0.0
    %116 = vmatpush.xpose.msra.mxu0 0.0
    %117 = vmatpush.xpose.msra.mxu0 0.0
    %118 = vmatpush.xpose.msra.mxu0 0.0
    %119 = vmatpush.xpose.msra.mxu0 0.0
    %120 = vmatpush.xpose.msra.mxu0 0.0
    %121 = vmatpush.xpose.msra.mxu0 0.0
    %122 = vmatpush.xpose.msra.mxu0 0.0
    %123 = vmatpush.xpose.msra.mxu0 0.0
    %124 = vmatpush.xpose.msra.mxu0 0.0
    %125 = vmatpush.xpose.msra.mxu0 0.0
    %126 = vmatpush.xpose.msra.mxu0 0.0
    %127 = vmatpush.xpose.msra.mxu0 %v110
    %128 = vmatmul.f32.gmra.mxu0 %v84
    %v129 = vpop.f32.mrf.mxu0
    %v130 = vadd.f32 0.0, %v129
    %131 = vdwg.mxu0
    %v133 = vsel %vm82, %v76, 0
    %135 = vmatpush.xpose.msra.mxu0 0.0
    %136 = vmatpush.xpose.msra.mxu0 0.0
    %137 = vmatpush.xpose.msra.mxu0 0.0
    %138 = vmatpush.xpose.msra.mxu0 0.0
    %139 = vmatpush.xpose.msra.mxu0 0.0
    %140 = vmatpush.xpose.msra.mxu0 0.0
    %141 = vmatpush.xpose.msra.mxu0 0.0
    %142 = vmatpush.xpose.msra.mxu0 0.0
    %143 = vmatpush.xpose.msra.mxu0 0.0
    %144 = vmatpush.xpose.msra.mxu0 0.0
    %145 = vmatpush.xpose.msra.mxu0 0.0
    %146 = vmatpush.xpose.msra.mxu0 0.0
    %147 = vmatpush.xpose.msra.mxu0 0.0
    %148 = vmatpush.xpose.msra.mxu0 0.0
    %149 = vmatpush.xpose.msra.mxu0 0.0
    %150 = vmatpush.xpose.msra.mxu0 %v133
    %151 = vmatmul.f32.gmra.mxu0 %v84
    %v152 = vpop.f32.mrf.mxu0
    %v153 = vadd.f32 0.0, %v152
    %154 = vdwg.mxu0
    %v156 = vsel %vm82, %v77, 0
    %158 = vmatpush.xpose.msra.mxu0 0.0
    %159 = vmatpush.xpose.msra.mxu0 0.0
    %160 = vmatpush.xpose.msra.mxu0 0.0
    %161 = vmatpush.xpose.msra.mxu0 0.0
    %162 = vmatpush.xpose.msra.mxu0 0.0
    %163 = vmatpush.xpose.msra.mxu0 0.0
    %164 = vmatpush.xpose.msra.mxu0 0.0
    %165 = vmatpush.xpose.msra.mxu0 0.0
    %166 = vmatpush.xpose.msra.mxu0 0.0
    %167 = vmatpush.xpose.msra.mxu0 0.0
    %168 = vmatpush.xpose.msra.mxu0 0.0
    %169 = vmatpush.xpose.msra.mxu0 0.0
    %170 = vmatpush.xpose.msra.mxu0 0.0
    %171 = vmatpush.xpose.msra.mxu0 0.0
    %172 = vmatpush.xpose.msra.mxu0 0.0
    %173 = vmatpush.xpose.msra.mxu0 %v156
    %174 = vmatmul.f32.gmra.mxu0 %v84
    %v175 = vpop.f32.mrf.mxu0
    %v176 = vadd.f32 0.0, %v175
    %177 = vdwg.mxu0
    %v179 = vsel %vm82, %v78, 0
    %181 = vmatpush.xpose.msra.mxu0 0.0
    %182 = vmatpush.xpose.msra.mxu0 0.0
    %183 = vmatpush.xpose.msra.mxu0 0.0
    %184 = vmatpush.xpose.msra.mxu0 0.0
    %185 = vmatpush.xpose.msra.mxu0 0.0
    %186 = vmatpush.xpose.msra.mxu0 0.0
    %187 = vmatpush.xpose.msra.mxu0 0.0
    %188 = vmatpush.xpose.msra.mxu0 0.0
    %189 = vmatpush.xpose.msra.mxu0 0.0
    %190 = vmatpush.xpose.msra.mxu0 0.0
    %191 = vmatpush.xpose.msra.mxu0 0.0
    %192 = vmatpush.xpose.msra.mxu0 0.0
    %193 = vmatpush.xpose.msra.mxu0 0.0
    %194 = vmatpush.xpose.msra.mxu0 0.0
    %195 = vmatpush.xpose.msra.mxu0 0.0
    %196 = vmatpush.xpose.msra.mxu0 %v179
    %197 = vmatmul.f32.gmra.mxu0 %v84
    %v198 = vpop.f32.mrf.mxu0
    %v199 = vadd.f32 0.0, %v198
    %200 = vdwg.mxu0
    %v202 = vsel %vm82, %v79, 0
    %204 = vmatpush.xpose.msra.mxu0 0.0
    %205 = vmatpush.xpose.msra.mxu0 0.0
    %206 = vmatpush.xpose.msra.mxu0 0.0
    %207 = vmatpush.xpose.msra.mxu0 0.0
    %208 = vmatpush.xpose.msra.mxu0 0.0
    %209 = vmatpush.xpose.msra.mxu0 0.0
    %210 = vmatpush.xpose.msra.mxu0 0.0
    %211 = vmatpush.xpose.msra.mxu0 0.0
    %212 = vmatpush.xpose.msra.mxu0 0.0
    %213 = vmatpush.xpose.msra.mxu0 0.0
    %214 = vmatpush.xpose.msra.mxu0 0.0
    %215 = vmatpush.xpose.msra.mxu0 0.0
    %216 = vmatpush.xpose.msra.mxu0 0.0
    %217 = vmatpush.xpose.msra.mxu0 0.0
    %218 = vmatpush.xpose.msra.mxu0 0.0
    %219 = vmatpush.xpose.msra.mxu0 %v202
    %220 = vmatmul.f32.gmra.mxu0 %v84
    %v221 = vpop.f32.mrf.mxu0
    %v222 = vadd.f32 0.0, %v221
    %223 = vdwg.mxu0
    %v225 = vsel %vm82, %v80, 0
    %227 = vmatpush.xpose.msra.mxu0 0.0
    %228 = vmatpush.xpose.msra.mxu0 0.0
    %229 = vmatpush.xpose.msra.mxu0 0.0
    %230 = vmatpush.xpose.msra.mxu0 0.0
    %231 = vmatpush.xpose.msra.mxu0 0.0
    %232 = vmatpush.xpose.msra.mxu0 0.0
    %233 = vmatpush.xpose.msra.mxu0 0.0
    %234 = vmatpush.xpose.msra.mxu0 0.0
    %235 = vmatpush.xpose.msra.mxu0 0.0
    %236 = vmatpush.xpose.msra.mxu0 0.0
    %237 = vmatpush.xpose.msra.mxu0 0.0
    %238 = vmatpush.xpose.msra.mxu0 0.0
    %239 = vmatpush.xpose.msra.mxu0 0.0
    %240 = vmatpush.xpose.msra.mxu0 0.0
    %241 = vmatpush.xpose.msra.mxu0 0.0
    %242 = vmatpush.xpose.msra.mxu0 %v225
    %243 = vmatmul.f32.gmra.mxu0 %v84
    %v244 = vpop.f32.mrf.mxu0
    %v245 = vadd.f32 0.0, %v244
    %246 = vdwg.mxu0
    %v248 = vsel %vm82, %v81, 0
    %250 = vmatpush.xpose.msra.mxu0 0.0
    %251 = vmatpush.xpose.msra.mxu0 0.0
    %252 = vmatpush.xpose.msra.mxu0 0.0
    %253 = vmatpush.xpose.msra.mxu0 0.0
    %254 = vmatpush.xpose.msra.mxu0 0.0
    %255 = vmatpush.xpose.msra.mxu0 0.0
    %256 = vmatpush.xpose.msra.mxu0 0.0
    %257 = vmatpush.xpose.msra.mxu0 0.0
    %258 = vmatpush.xpose.msra.mxu0 0.0
    %259 = vmatpush.xpose.msra.mxu0 0.0
    %260 = vmatpush.xpose.msra.mxu0 0.0
    %261 = vmatpush.xpose.msra.mxu0 0.0
    %262 = vmatpush.xpose.msra.mxu0 0.0
    %263 = vmatpush.xpose.msra.mxu0 0.0
    %264 = vmatpush.xpose.msra.mxu0 0.0
    %265 = vmatpush.xpose.msra.mxu0 %v248
    %266 = vmatmul.f32.gmra.mxu0 %v84
    %v267 = vpop.f32.mrf.mxu0
    %v268 = vadd.f32 0.0, %v267
    %269 = vdwg.mxu0
    %v271 = vsel %vm82, %v73, 0
    %273 = vmatpush.xpose.msra.mxu0 0.0
    %274 = vmatpush.xpose.msra.mxu0 0.0
    %275 = vmatpush.xpose.msra.mxu0 0.0
    %276 = vmatpush.xpose.msra.mxu0 0.0
    %277 = vmatpush.xpose.msra.mxu0 0.0
    %278 = vmatpush.xpose.msra.mxu0 0.0
    %279 = vmatpush.xpose.msra.mxu0 0.0
    %280 = vmatpush.xpose.msra.mxu0 0.0
    %281 = vmatpush.xpose.msra.mxu0 0.0
    %282 = vmatpush.xpose.msra.mxu0 0.0
    %283 = vmatpush.xpose.msra.mxu0 0.0
    %284 = vmatpush.xpose.msra.mxu0 0.0
    %285 = vmatpush.xpose.msra.mxu0 0.0
    %286 = vmatpush.xpose.msra.mxu0 0.0
    %287 = vmatpush.xpose.msra.mxu0 0.0
    %288 = vmatpush.xpose.msra.mxu0 %v87
    %289 = vmatmul.f32.gmra.mxu0 %v271
    %v290 = vpop.f32.mrf.mxu0
    %v291 = vadd.f32 0.0, %v290
    %292 = vdwg.mxu0
    %293 = vmatpush.xpose.msra.mxu0 0.0
    %294 = vmatpush.xpose.msra.mxu0 0.0
    %295 = vmatpush.xpose.msra.mxu0 0.0
    %296 = vmatpush.xpose.msra.mxu0 0.0
    %297 = vmatpush.xpose.msra.mxu0 0.0
    %298 = vmatpush.xpose.msra.mxu0 0.0
    %299 = vmatpush.xpose.msra.mxu0 0.0
    %300 = vmatpush.xpose.msra.mxu0 0.0
    %301 = vmatpush.xpose.msra.mxu0 0.0
    %302 = vmatpush.xpose.msra.mxu0 0.0
    %303 = vmatpush.xpose.msra.mxu0 0.0
    %304 = vmatpush.xpose.msra.mxu0 0.0
    %305 = vmatpush.xpose.msra.mxu0 0.0
    %306 = vmatpush.xpose.msra.mxu0 0.0
    %307 = vmatpush.xpose.msra.mxu0 0.0
    %308 = vmatpush.xpose.msra.mxu0 %v110
    %309 = vmatmul.f32.gmra.mxu0 %v271
    %v310 = vpop.f32.mrf.mxu0
    %v311 = vadd.f32 0.0, %v310
    %312 = vdwg.mxu0
    %313 = vmatpush.xpose.msra.mxu0 0.0
    %314 = vmatpush.xpose.msra.mxu0 0.0
    %315 = vmatpush.xpose.msra.mxu0 0.0
    %316 = vmatpush.xpose.msra.mxu0 0.0
    %317 = vmatpush.xpose.msra.mxu0 0.0
    %318 = vmatpush.xpose.msra.mxu0 0.0
    %319 = vmatpush.xpose.msra.mxu0 0.0
    %320 = vmatpush.xpose.msra.mxu0 0.0
    %321 = vmatpush.xpose.msra.mxu0 0.0
    %322 = vmatpush.xpose.msra.mxu0 0.0
    %323 = vmatpush.xpose.msra.mxu0 0.0
    %324 = vmatpush.xpose.msra.mxu0 0.0
    %325 = vmatpush.xpose.msra.mxu0 0.0
    %326 = vmatpush.xpose.msra.mxu0 0.0
    %327 = vmatpush.xpose.msra.mxu0 0.0
    %328 = vmatpush.xpose.msra.mxu0 %v133
    %329 = vmatmul.f32.gmra.mxu0 %v271
    %v330 = vpop.f32.mrf.mxu0
    %v331 = vadd.f32 0.0, %v330
    %332 = vdwg.mxu0
    %333 = vmatpush.xpose.msra.mxu0 0.0
    %334 = vmatpush.xpose.msra.mxu0 0.0
    %335 = vmatpush.xpose.msra.mxu0 0.0
    %336 = vmatpush.xpose.msra.mxu0 0.0
    %337 = vmatpush.xpose.msra.mxu0 0.0
    %338 = vmatpush.xpose.msra.mxu0 0.0
    %339 = vmatpush.xpose.msra.mxu0 0.0
    %340 = vmatpush.xpose.msra.mxu0 0.0
    %341 = vmatpush.xpose.msra.mxu0 0.0
    %342 = vmatpush.xpose.msra.mxu0 0.0
    %343 = vmatpush.xpose.msra.mxu0 0.0
    %344 = vmatpush.xpose.msra.mxu0 0.0
    %345 = vmatpush.xpose.msra.mxu0 0.0
    %346 = vmatpush.xpose.msra.mxu0 0.0
    %347 = vmatpush.xpose.msra.mxu0 0.0
    %348 = vmatpush.xpose.msra.mxu0 %v156
    %349 = vmatmul.f32.gmra.mxu0 %v271
    %v350 = vpop.f32.mrf.mxu0
    %v351 = vadd.f32 0.0, %v350
    %352 = vdwg.mxu0
    %353 = vmatpush.xpose.msra.mxu0 0.0
    %354 = vmatpush.xpose.msra.mxu0 0.0
    %355 = vmatpush.xpose.msra.mxu0 0.0
    %356 = vmatpush.xpose.msra.mxu0 0.0
    %357 = vmatpush.xpose.msra.mxu0 0.0
    %358 = vmatpush.xpose.msra.mxu0 0.0
    %359 = vmatpush.xpose.msra.mxu0 0.0
    %360 = vmatpush.xpose.msra.mxu0 0.0
    %361 = vmatpush.xpose.msra.mxu0 0.0
    %362 = vmatpush.xpose.msra.mxu0 0.0
    %363 = vmatpush.xpose.msra.mxu0 0.0
    %364 = vmatpush.xpose.msra.mxu0 0.0
    %365 = vmatpush.xpose.msra.mxu0 0.0
    %366 = vmatpush.xpose.msra.mxu0 0.0
    %367 = vmatpush.xpose.msra.mxu0 0.0
    %368 = vmatpush.xpose.msra.mxu0 %v179
    %369 = vmatmul.f32.gmra.mxu0 %v271
    %v370 = vpop.f32.mrf.mxu0
    %v371 = vadd.f32 0.0, %v370
    %372 = vdwg.mxu0
    %373 = vmatpush.xpose.msra.mxu0 0.0
    %374 = vmatpush.xpose.msra.mxu0 0.0
    %375 = vmatpush.xpose.msra.mxu0 0.0
    %376 = vmatpush.xpose.msra.mxu0 0.0
    %377 = vmatpush.xpose.msra.mxu0 0.0
    %378 = vmatpush.xpose.msra.mxu0 0.0
    %379 = vmatpush.xpose.msra.mxu0 0.0
    %380 = vmatpush.xpose.msra.mxu0 0.0
    %381 = vmatpush.xpose.msra.mxu0 0.0
    %382 = vmatpush.xpose.msra.mxu0 0.0
    %383 = vmatpush.xpose.msra.mxu0 0.0
    %384 = vmatpush.xpose.msra.mxu0 0.0
    %385 = vmatpush.xpose.msra.mxu0 0.0
    %386 = vmatpush.xpose.msra.mxu0 0.0
    %387 = vmatpush.xpose.msra.mxu0 0.0
    %388 = vmatpush.xpose.msra.mxu0 %v202
    %389 = vmatmul.f32.gmra.mxu0 %v271
    %v390 = vpop.f32.mrf.mxu0
    %v391 = vadd.f32 0.0, %v390
    %392 = vdwg.mxu0
    %393 = vmatpush.xpose.msra.mxu0 0.0
    %394 = vmatpush.xpose.msra.mxu0 0.0
    %395 = vmatpush.xpose.msra.mxu0 0.0
    %396 = vmatpush.xpose.msra.mxu0 0.0
    %397 = vmatpush.xpose.msra.mxu0 0.0
    %398 = vmatpush.xpose.msra.mxu0 0.0
    %399 = vmatpush.xpose.msra.mxu0 0.0
    %400 = vmatpush.xpose.msra.mxu0 0.0
    %401 = vmatpush.xpose.msra.mxu0 0.0
    %402 = vmatpush.xpose.msra.mxu0 0.0
    %403 = vmatpush.xpose.msra.mxu0 0.0
    %404 = vmatpush.xpose.msra.mxu0 0.0
    %405 = vmatpush.xpose.msra.mxu0 0.0
    %406 = vmatpush.xpose.msra.mxu0 0.0
    %407 = vmatpush.xpose.msra.mxu0 0.0
    %408 = vmatpush.xpose.msra.mxu0 %v225
    %409 = vmatmul.f32.gmra.mxu0 %v271
    %v410 = vpop.f32.mrf.mxu0
    %v411 = vadd.f32 0.0, %v410
    %412 = vdwg.mxu0
    %413 = vmatpush.xpose.msra.mxu0 0.0
    %414 = vmatpush.xpose.msra.mxu0 0.0
    %415 = vmatpush.xpose.msra.mxu0 0.0
    %416 = vmatpush.xpose.msra.mxu0 0.0
    %417 = vmatpush.xpose.msra.mxu0 0.0
    %418 = vmatpush.xpose.msra.mxu0 0.0
    %419 = vmatpush.xpose.msra.mxu0 0.0
    %420 = vmatpush.xpose.msra.mxu0 0.0
    %421 = vmatpush.xpose.msra.mxu0 0.0
    %422 = vmatpush.xpose.msra.mxu0 0.0
    %423 = vmatpush.xpose.msra.mxu0 0.0
    %424 = vmatpush.xpose.msra.mxu0 0.0
    %425 = vmatpush.xpose.msra.mxu0 0.0
    %426 = vmatpush.xpose.msra.mxu0 0.0
    %427 = vmatpush.xpose.msra.mxu0 0.0
    %428 = vmatpush.xpose.msra.mxu0 %v248
    %429 = vmatmul.f32.gmra.mxu0 %v271
    %v430 = vpop.f32.mrf.mxu0
    %v431 = vadd.f32 0.0, %v430
    %432 = vdwg.mxu0
    %v433 = vld [vmem:[%s3] sm:$0xf]
    %v434 = vld [vmem:[%s3 + $0x4] sm:$0xf]
    %v435 = vld [vmem:[%s3 + $0x8] sm:$0xf]
    %v436 = vld [vmem:[%s3 + $0xc] sm:$0xf]
    %v437 = vld [vmem:[%s3 + $0x10] sm:$0xf]
    %v438 = vld [vmem:[%s3 + $0x14] sm:$0xf]
    %v439 = vld [vmem:[%s3 + $0x18] sm:$0xf]
    %v440 = vld [vmem:[%s3 + $0x1c] sm:$0xf]
    %v442 = vsel %vm82, %v433, 0
    %444 = vmatpush.xpose.msra.mxu0 0.0
    %445 = vmatpush.xpose.msra.mxu0 0.0
    %446 = vmatpush.xpose.msra.mxu0 0.0
    %447 = vmatpush.xpose.msra.mxu0 0.0
    %448 = vmatpush.xpose.msra.mxu0 0.0
    %449 = vmatpush.xpose.msra.mxu0 0.0
    %450 = vmatpush.xpose.msra.mxu0 0.0
    %451 = vmatpush.xpose.msra.mxu0 0.0
    %452 = vmatpush.xpose.msra.mxu0 0.0
    %453 = vmatpush.xpose.msra.mxu0 0.0
    %454 = vmatpush.xpose.msra.mxu0 0.0
    %455 = vmatpush.xpose.msra.mxu0 0.0
    %456 = vmatpush.xpose.msra.mxu0 0.0
    %457 = vmatpush.xpose.msra.mxu0 0.0
    %458 = vmatpush.xpose.msra.mxu0 0.0
    %459 = vmatpush.xpose.msra.mxu0 %v442
    %460 = vmatmul.f32.gmra.mxu0 %v84
    %v461 = vpop.f32.mrf.mxu0
    %v462 = vadd.f32 0.0, %v461
    %463 = vdwg.mxu0
    %v465 = vsel %vm82, %v434, 0
    %467 = vmatpush.xpose.msra.mxu0 0.0
    %468 = vmatpush.xpose.msra.mxu0 0.0
    %469 = vmatpush.xpose.msra.mxu0 0.0
    %470 = vmatpush.xpose.msra.mxu0 0.0
    %471 = vmatpush.xpose.msra.mxu0 0.0
    %472 = vmatpush.xpose.msra.mxu0 0.0
    %473 = vmatpush.xpose.msra.mxu0 0.0
    %474 = vmatpush.xpose.msra.mxu0 0.0
    %475 = vmatpush.xpose.msra.mxu0 0.0
    %476 = vmatpush.xpose.msra.mxu0 0.0
    %477 = vmatpush.xpose.msra.mxu0 0.0
    %478 = vmatpush.xpose.msra.mxu0 0.0
    %479 = vmatpush.xpose.msra.mxu0 0.0
    %480 = vmatpush.xpose.msra.mxu0 0.0
    %481 = vmatpush.xpose.msra.mxu0 0.0
    %482 = vmatpush.xpose.msra.mxu0 %v465
    %483 = vmatmul.f32.gmra.mxu0 %v84
    %v484 = vpop.f32.mrf.mxu0
    %v485 = vadd.f32 0.0, %v484
    %486 = vdwg.mxu0
    %v488 = vsel %vm82, %v435, 0
    %490 = vmatpush.xpose.msra.mxu0 0.0
    %491 = vmatpush.xpose.msra.mxu0 0.0
    %492 = vmatpush.xpose.msra.mxu0 0.0
    %493 = vmatpush.xpose.msra.mxu0 0.0
    %494 = vmatpush.xpose.msra.mxu0 0.0
    %495 = vmatpush.xpose.msra.mxu0 0.0
    %496 = vmatpush.xpose.msra.mxu0 0.0
    %497 = vmatpush.xpose.msra.mxu0 0.0
    %498 = vmatpush.xpose.msra.mxu0 0.0
    %499 = vmatpush.xpose.msra.mxu0 0.0
    %500 = vmatpush.xpose.msra.mxu0 0.0
    %501 = vmatpush.xpose.msra.mxu0 0.0
    %502 = vmatpush.xpose.msra.mxu0 0.0
    %503 = vmatpush.xpose.msra.mxu0 0.0
    %504 = vmatpush.xpose.msra.mxu0 0.0
    %505 = vmatpush.xpose.msra.mxu0 %v488
    %506 = vmatmul.f32.gmra.mxu0 %v84
    %v507 = vpop.f32.mrf.mxu0
    %v508 = vadd.f32 0.0, %v507
    %509 = vdwg.mxu0
    %v511 = vsel %vm82, %v436, 0
    %513 = vmatpush.xpose.msra.mxu0 0.0
    %514 = vmatpush.xpose.msra.mxu0 0.0
    %515 = vmatpush.xpose.msra.mxu0 0.0
    %516 = vmatpush.xpose.msra.mxu0 0.0
    %517 = vmatpush.xpose.msra.mxu0 0.0
    %518 = vmatpush.xpose.msra.mxu0 0.0
    %519 = vmatpush.xpose.msra.mxu0 0.0
    %520 = vmatpush.xpose.msra.mxu0 0.0
    %521 = vmatpush.xpose.msra.mxu0 0.0
    %522 = vmatpush.xpose.msra.mxu0 0.0
    %523 = vmatpush.xpose.msra.mxu0 0.0
    %524 = vmatpush.xpose.msra.mxu0 0.0
    %525 = vmatpush.xpose.msra.mxu0 0.0
    %526 = vmatpush.xpose.msra.mxu0 0.0
    %527 = vmatpush.xpose.msra.mxu0 0.0
    %528 = vmatpush.xpose.msra.mxu0 %v511
    %529 = vmatmul.f32.gmra.mxu0 %v84
    %v530 = vpop.f32.mrf.mxu0
    %v531 = vadd.f32 0.0, %v530
    %532 = vdwg.mxu0
    %v534 = vsel %vm82, %v437, 0
    %536 = vmatpush.xpose.msra.mxu0 0.0
    %537 = vmatpush.xpose.msra.mxu0 0.0
    %538 = vmatpush.xpose.msra.mxu0 0.0
    %539 = vmatpush.xpose.msra.mxu0 0.0
    %540 = vmatpush.xpose.msra.mxu0 0.0
    %541 = vmatpush.xpose.msra.mxu0 0.0
    %542 = vmatpush.xpose.msra.mxu0 0.0
    %543 = vmatpush.xpose.msra.mxu0 0.0
    %544 = vmatpush.xpose.msra.mxu0 0.0
    %545 = vmatpush.xpose.msra.mxu0 0.0
    %546 = vmatpush.xpose.msra.mxu0 0.0
    %547 = vmatpush.xpose.msra.mxu0 0.0
    %548 = vmatpush.xpose.msra.mxu0 0.0
    %549 = vmatpush.xpose.msra.mxu0 0.0
    %550 = vmatpush.xpose.msra.mxu0 0.0
    %551 = vmatpush.xpose.msra.mxu0 %v534
    %552 = vmatmul.f32.gmra.mxu0 %v84
    %v553 = vpop.f32.mrf.mxu0
    %v554 = vadd.f32 0.0, %v553
    %555 = vdwg.mxu0
    %v557 = vsel %vm82, %v438, 0
    %559 = vmatpush.xpose.msra.mxu0 0.0
    %560 = vmatpush.xpose.msra.mxu0 0.0
    %561 = vmatpush.xpose.msra.mxu0 0.0
    %562 = vmatpush.xpose.msra.mxu0 0.0
    %563 = vmatpush.xpose.msra.mxu0 0.0
    %564 = vmatpush.xpose.msra.mxu0 0.0
    %565 = vmatpush.xpose.msra.mxu0 0.0
    %566 = vmatpush.xpose.msra.mxu0 0.0
    %567 = vmatpush.xpose.msra.mxu0 0.0
    %568 = vmatpush.xpose.msra.mxu0 0.0
    %569 = vmatpush.xpose.msra.mxu0 0.0
    %570 = vmatpush.xpose.msra.mxu0 0.0
    %571 = vmatpush.xpose.msra.mxu0 0.0
    %572 = vmatpush.xpose.msra.mxu0 0.0
    %573 = vmatpush.xpose.msra.mxu0 0.0
    %574 = vmatpush.xpose.msra.mxu0 %v557
    %575 = vmatmul.f32.gmra.mxu0 %v84
    %v576 = vpop.f32.mrf.mxu0
    %v577 = vadd.f32 0.0, %v576
    %578 = vdwg.mxu0
    %v580 = vsel %vm82, %v439, 0
    %582 = vmatpush.xpose.msra.mxu0 0.0
    %583 = vmatpush.xpose.msra.mxu0 0.0
    %584 = vmatpush.xpose.msra.mxu0 0.0
    %585 = vmatpush.xpose.msra.mxu0 0.0
    %586 = vmatpush.xpose.msra.mxu0 0.0
    %587 = vmatpush.xpose.msra.mxu0 0.0
    %588 = vmatpush.xpose.msra.mxu0 0.0
    %589 = vmatpush.xpose.msra.mxu0 0.0
    %590 = vmatpush.xpose.msra.mxu0 0.0
    %591 = vmatpush.xpose.msra.mxu0 0.0
    %592 = vmatpush.xpose.msra.mxu0 0.0
    %593 = vmatpush.xpose.msra.mxu0 0.0
    %594 = vmatpush.xpose.msra.mxu0 0.0
    %595 = vmatpush.xpose.msra.mxu0 0.0
    %596 = vmatpush.xpose.msra.mxu0 0.0
    %597 = vmatpush.xpose.msra.mxu0 %v580
    %598 = vmatmul.f32.gmra.mxu0 %v84
    %v599 = vpop.f32.mrf.mxu0
    %v600 = vadd.f32 0.0, %v599
    %601 = vdwg.mxu0
    %v603 = vsel %vm82, %v440, 0
    %605 = vmatpush.xpose.msra.mxu0 0.0
    %606 = vmatpush.xpose.msra.mxu0 0.0
    %607 = vmatpush.xpose.msra.mxu0 0.0
    %608 = vmatpush.xpose.msra.mxu0 0.0
    %609 = vmatpush.xpose.msra.mxu0 0.0
    %610 = vmatpush.xpose.msra.mxu0 0.0
    %611 = vmatpush.xpose.msra.mxu0 0.0
    %612 = vmatpush.xpose.msra.mxu0 0.0
    %613 = vmatpush.xpose.msra.mxu0 0.0
    %614 = vmatpush.xpose.msra.mxu0 0.0
    %615 = vmatpush.xpose.msra.mxu0 0.0
    %616 = vmatpush.xpose.msra.mxu0 0.0
    %617 = vmatpush.xpose.msra.mxu0 0.0
    %618 = vmatpush.xpose.msra.mxu0 0.0
    %619 = vmatpush.xpose.msra.mxu0 0.0
    %620 = vmatpush.xpose.msra.mxu0 %v603
    %621 = vmatmul.f32.gmra.mxu0 %v84
    %v622 = vpop.f32.mrf.mxu0
    %v623 = vadd.f32 0.0, %v622
    %624 = vdwg.mxu0
    %625 = vmatpush.xpose.msra.mxu0 0.0
    %626 = vmatpush.xpose.msra.mxu0 0.0
    %627 = vmatpush.xpose.msra.mxu0 0.0
    %628 = vmatpush.xpose.msra.mxu0 0.0
    %629 = vmatpush.xpose.msra.mxu0 0.0
    %630 = vmatpush.xpose.msra.mxu0 0.0
    %631 = vmatpush.xpose.msra.mxu0 0.0
    %632 = vmatpush.xpose.msra.mxu0 0.0
    %633 = vmatpush.xpose.msra.mxu0 0.0
    %634 = vmatpush.xpose.msra.mxu0 0.0
    %635 = vmatpush.xpose.msra.mxu0 0.0
    %636 = vmatpush.xpose.msra.mxu0 0.0
    %637 = vmatpush.xpose.msra.mxu0 0.0
    %638 = vmatpush.xpose.msra.mxu0 0.0
    %639 = vmatpush.xpose.msra.mxu0 0.0
    %640 = vmatpush.xpose.msra.mxu0 %v442
    %641 = vmatmul.f32.gmra.mxu0 %v271
    %v642 = vpop.f32.mrf.mxu0
    %v643 = vadd.f32 0.0, %v642
    %644 = vdwg.mxu0
    %645 = vmatpush.xpose.msra.mxu0 0.0
    %646 = vmatpush.xpose.msra.mxu0 0.0
    %647 = vmatpush.xpose.msra.mxu0 0.0
    %648 = vmatpush.xpose.msra.mxu0 0.0
    %649 = vmatpush.xpose.msra.mxu0 0.0
    %650 = vmatpush.xpose.msra.mxu0 0.0
    %651 = vmatpush.xpose.msra.mxu0 0.0
    %652 = vmatpush.xpose.msra.mxu0 0.0
    %653 = vmatpush.xpose.msra.mxu0 0.0
    %654 = vmatpush.xpose.msra.mxu0 0.0
    %655 = vmatpush.xpose.msra.mxu0 0.0
    %656 = vmatpush.xpose.msra.mxu0 0.0
    %657 = vmatpush.xpose.msra.mxu0 0.0
    %658 = vmatpush.xpose.msra.mxu0 0.0
    %659 = vmatpush.xpose.msra.mxu0 0.0
    %660 = vmatpush.xpose.msra.mxu0 %v465
    %661 = vmatmul.f32.gmra.mxu0 %v271
    %v662 = vpop.f32.mrf.mxu0
    %v663 = vadd.f32 0.0, %v662
    %664 = vdwg.mxu0
    %665 = vmatpush.xpose.msra.mxu0 0.0
    %666 = vmatpush.xpose.msra.mxu0 0.0
    %667 = vmatpush.xpose.msra.mxu0 0.0
    %668 = vmatpush.xpose.msra.mxu0 0.0
    %669 = vmatpush.xpose.msra.mxu0 0.0
    %670 = vmatpush.xpose.msra.mxu0 0.0
    %671 = vmatpush.xpose.msra.mxu0 0.0
    %672 = vmatpush.xpose.msra.mxu0 0.0
    %673 = vmatpush.xpose.msra.mxu0 0.0
    %674 = vmatpush.xpose.msra.mxu0 0.0
    %675 = vmatpush.xpose.msra.mxu0 0.0
    %676 = vmatpush.xpose.msra.mxu0 0.0
    %677 = vmatpush.xpose.msra.mxu0 0.0
    %678 = vmatpush.xpose.msra.mxu0 0.0
    %679 = vmatpush.xpose.msra.mxu0 0.0
    %680 = vmatpush.xpose.msra.mxu0 %v488
    %681 = vmatmul.f32.gmra.mxu0 %v271
    %v682 = vpop.f32.mrf.mxu0
    %v683 = vadd.f32 0.0, %v682
    %684 = vdwg.mxu0
    %685 = vmatpush.xpose.msra.mxu0 0.0
    %686 = vmatpush.xpose.msra.mxu0 0.0
    %687 = vmatpush.xpose.msra.mxu0 0.0
    %688 = vmatpush.xpose.msra.mxu0 0.0
    %689 = vmatpush.xpose.msra.mxu0 0.0
    %690 = vmatpush.xpose.msra.mxu0 0.0
    %691 = vmatpush.xpose.msra.mxu0 0.0
    %692 = vmatpush.xpose.msra.mxu0 0.0
    %693 = vmatpush.xpose.msra.mxu0 0.0
    %694 = vmatpush.xpose.msra.mxu0 0.0
    %695 = vmatpush.xpose.msra.mxu0 0.0
    %696 = vmatpush.xpose.msra.mxu0 0.0
    %697 = vmatpush.xpose.msra.mxu0 0.0
    %698 = vmatpush.xpose.msra.mxu0 0.0
    %699 = vmatpush.xpose.msra.mxu0 0.0
    %700 = vmatpush.xpose.msra.mxu0 %v511
    %701 = vmatmul.f32.gmra.mxu0 %v271
    %v702 = vpop.f32.mrf.mxu0
    %v703 = vadd.f32 0.0, %v702
    %704 = vdwg.mxu0
    %705 = vmatpush.xpose.msra.mxu0 0.0
    %706 = vmatpush.xpose.msra.mxu0 0.0
    %707 = vmatpush.xpose.msra.mxu0 0.0
    %708 = vmatpush.xpose.msra.mxu0 0.0
    %709 = vmatpush.xpose.msra.mxu0 0.0
    %710 = vmatpush.xpose.msra.mxu0 0.0
    %711 = vmatpush.xpose.msra.mxu0 0.0
    %712 = vmatpush.xpose.msra.mxu0 0.0
    %713 = vmatpush.xpose.msra.mxu0 0.0
    %714 = vmatpush.xpose.msra.mxu0 0.0
    %715 = vmatpush.xpose.msra.mxu0 0.0
    %716 = vmatpush.xpose.msra.mxu0 0.0
    %717 = vmatpush.xpose.msra.mxu0 0.0
    %718 = vmatpush.xpose.msra.mxu0 0.0
    %719 = vmatpush.xpose.msra.mxu0 0.0
    %720 = vmatpush.xpose.msra.mxu0 %v534
    %721 = vmatmul.f32.gmra.mxu0 %v271
    %v722 = vpop.f32.mrf.mxu0
    %v723 = vadd.f32 0.0, %v722
    %724 = vdwg.mxu0
    %725 = vmatpush.xpose.msra.mxu0 0.0
    %726 = vmatpush.xpose.msra.mxu0 0.0
    %727 = vmatpush.xpose.msra.mxu0 0.0
    %728 = vmatpush.xpose.msra.mxu0 0.0
    %729 = vmatpush.xpose.msra.mxu0 0.0
    %730 = vmatpush.xpose.msra.mxu0 0.0
    %731 = vmatpush.xpose.msra.mxu0 0.0
    %732 = vmatpush.xpose.msra.mxu0 0.0
    %733 = vmatpush.xpose.msra.mxu0 0.0
    %734 = vmatpush.xpose.msra.mxu0 0.0
    %735 = vmatpush.xpose.msra.mxu0 0.0
    %736 = vmatpush.xpose.msra.mxu0 0.0
    %737 = vmatpush.xpose.msra.mxu0 0.0
    %738 = vmatpush.xpose.msra.mxu0 0.0
    %739 = vmatpush.xpose.msra.mxu0 0.0
    %740 = vmatpush.xpose.msra.mxu0 %v557
    %741 = vmatmul.f32.gmra.mxu0 %v271
    %v742 = vpop.f32.mrf.mxu0
    %v743 = vadd.f32 0.0, %v742
    %744 = vdwg.mxu0
    %745 = vmatpush.xpose.msra.mxu0 0.0
    %746 = vmatpush.xpose.msra.mxu0 0.0
    %747 = vmatpush.xpose.msra.mxu0 0.0
    %748 = vmatpush.xpose.msra.mxu0 0.0
    %749 = vmatpush.xpose.msra.mxu0 0.0
    %750 = vmatpush.xpose.msra.mxu0 0.0
    %751 = vmatpush.xpose.msra.mxu0 0.0
    %752 = vmatpush.xpose.msra.mxu0 0.0
    %753 = vmatpush.xpose.msra.mxu0 0.0
    %754 = vmatpush.xpose.msra.mxu0 0.0
    %755 = vmatpush.xpose.msra.mxu0 0.0
    %756 = vmatpush.xpose.msra.mxu0 0.0
    %757 = vmatpush.xpose.msra.mxu0 0.0
    %758 = vmatpush.xpose.msra.mxu0 0.0
    %759 = vmatpush.xpose.msra.mxu0 0.0
    %760 = vmatpush.xpose.msra.mxu0 %v580
    %761 = vmatmul.f32.gmra.mxu0 %v271
    %v762 = vpop.f32.mrf.mxu0
    %v763 = vadd.f32 0.0, %v762
    %764 = vdwg.mxu0
    %765 = vmatpush.xpose.msra.mxu0 0.0
    %766 = vmatpush.xpose.msra.mxu0 0.0
    %767 = vmatpush.xpose.msra.mxu0 0.0
    %768 = vmatpush.xpose.msra.mxu0 0.0
    %769 = vmatpush.xpose.msra.mxu0 0.0
    %770 = vmatpush.xpose.msra.mxu0 0.0
    %771 = vmatpush.xpose.msra.mxu0 0.0
    %772 = vmatpush.xpose.msra.mxu0 0.0
    %773 = vmatpush.xpose.msra.mxu0 0.0
    %774 = vmatpush.xpose.msra.mxu0 0.0
    %775 = vmatpush.xpose.msra.mxu0 0.0
    %776 = vmatpush.xpose.msra.mxu0 0.0
    %777 = vmatpush.xpose.msra.mxu0 0.0
    %778 = vmatpush.xpose.msra.mxu0 0.0
    %779 = vmatpush.xpose.msra.mxu0 0.0
    %780 = vmatpush.xpose.msra.mxu0 %v603
    %781 = vmatmul.f32.gmra.mxu0 %v271
    %v782 = vpop.f32.mrf.mxu0
    %v783 = vadd.f32 0.0, %v782
    %784 = vdwg.mxu0
    %v785 = vld [vmem:[#allocation7] sm:$0xf]
    %v786 = vld [vmem:[#allocation7 + $0x4] sm:$0xf]
    %v787 = vld [vmem:[#allocation7 + $0x8] sm:$0xf]
    %v788 = vld [vmem:[#allocation7 + $0xc] sm:$0xf]
    %v789 = vld [vmem:[#allocation7 + $0x10] sm:$0xf]
    %v790 = vld [vmem:[#allocation7 + $0x14] sm:$0xf]
    %v791 = vld [vmem:[#allocation7 + $0x18] sm:$0xf]
    %v792 = vld [vmem:[#allocation7 + $0x1c] sm:$0xf]
    %v794 = vsel %vm82, %v785, 0
    %796 = vmatpush.xpose.msra.mxu0 0.0
    %797 = vmatpush.xpose.msra.mxu0 0.0
    %798 = vmatpush.xpose.msra.mxu0 0.0
    %799 = vmatpush.xpose.msra.mxu0 0.0
    %800 = vmatpush.xpose.msra.mxu0 0.0
    %801 = vmatpush.xpose.msra.mxu0 0.0
    %802 = vmatpush.xpose.msra.mxu0 0.0
    %803 = vmatpush.xpose.msra.mxu0 0.0
    %804 = vmatpush.xpose.msra.mxu0 0.0
    %805 = vmatpush.xpose.msra.mxu0 0.0
    %806 = vmatpush.xpose.msra.mxu0 0.0
    %807 = vmatpush.xpose.msra.mxu0 0.0
    %808 = vmatpush.xpose.msra.mxu0 0.0
    %809 = vmatpush.xpose.msra.mxu0 0.0
    %810 = vmatpush.xpose.msra.mxu0 0.0
    %811 = vmatpush.xpose.msra.mxu0 %v794
    %812 = vmatmul.f32.gmra.mxu0 %v84
    %v813 = vpop.f32.mrf.mxu0
    %v814 = vadd.f32 0.0, %v813
    %815 = vdwg.mxu0
    %v817 = vsel %vm82, %v786, 0
    %819 = vmatpush.xpose.msra.mxu0 0.0
    %820 = vmatpush.xpose.msra.mxu0 0.0
    %821 = vmatpush.xpose.msra.mxu0 0.0
    %822 = vmatpush.xpose.msra.mxu0 0.0
    %823 = vmatpush.xpose.msra.mxu0 0.0
    %824 = vmatpush.xpose.msra.mxu0 0.0
    %825 = vmatpush.xpose.msra.mxu0 0.0
    %826 = vmatpush.xpose.msra.mxu0 0.0
    %827 = vmatpush.xpose.msra.mxu0 0.0
    %828 = vmatpush.xpose.msra.mxu0 0.0
    %829 = vmatpush.xpose.msra.mxu0 0.0
    %830 = vmatpush.xpose.msra.mxu0 0.0
    %831 = vmatpush.xpose.msra.mxu0 0.0
    %832 = vmatpush.xpose.msra.mxu0 0.0
    %833 = vmatpush.xpose.msra.mxu0 0.0
    %834 = vmatpush.xpose.msra.mxu0 %v817
    %835 = vmatmul.f32.gmra.mxu0 %v84
    %v836 = vpop.f32.mrf.mxu0
    %v837 = vadd.f32 0.0, %v836
    %838 = vdwg.mxu0
    %v840 = vsel %vm82, %v787, 0
    %842 = vmatpush.xpose.msra.mxu0 0.0
    %843 = vmatpush.xpose.msra.mxu0 0.0
    %844 = vmatpush.xpose.msra.mxu0 0.0
    %845 = vmatpush.xpose.msra.mxu0 0.0
    %846 = vmatpush.xpose.msra.mxu0 0.0
    %847 = vmatpush.xpose.msra.mxu0 0.0
    %848 = vmatpush.xpose.msra.mxu0 0.0
    %849 = vmatpush.xpose.msra.mxu0 0.0
    %850 = vmatpush.xpose.msra.mxu0 0.0
    %851 = vmatpush.xpose.msra.mxu0 0.0
    %852 = vmatpush.xpose.msra.mxu0 0.0
    %853 = vmatpush.xpose.msra.mxu0 0.0
    %854 = vmatpush.xpose.msra.mxu0 0.0
    %855 = vmatpush.xpose.msra.mxu0 0.0
    %856 = vmatpush.xpose.msra.mxu0 0.0
    %857 = vmatpush.xpose.msra.mxu0 %v840
    %858 = vmatmul.f32.gmra.mxu0 %v84
    %v859 = vpop.f32.mrf.mxu0
    %v860 = vadd.f32 0.0, %v859
    %861 = vdwg.mxu0
    %v863 = vsel %vm82, %v788, 0
    %865 = vmatpush.xpose.msra.mxu0 0.0
    %866 = vmatpush.xpose.msra.mxu0 0.0
    %867 = vmatpush.xpose.msra.mxu0 0.0
    %868 = vmatpush.xpose.msra.mxu0 0.0
    %869 = vmatpush.xpose.msra.mxu0 0.0
    %870 = vmatpush.xpose.msra.mxu0 0.0
    %871 = vmatpush.xpose.msra.mxu0 0.0
    %872 = vmatpush.xpose.msra.mxu0 0.0
    %873 = vmatpush.xpose.msra.mxu0 0.0
    %874 = vmatpush.xpose.msra.mxu0 0.0
    %875 = vmatpush.xpose.msra.mxu0 0.0
    %876 = vmatpush.xpose.msra.mxu0 0.0
    %877 = vmatpush.xpose.msra.mxu0 0.0
    %878 = vmatpush.xpose.msra.mxu0 0.0
    %879 = vmatpush.xpose.msra.mxu0 0.0
    %880 = vmatpush.xpose.msra.mxu0 %v863
    %881 = vmatmul.f32.gmra.mxu0 %v84
    %v882 = vpop.f32.mrf.mxu0
    %v883 = vadd.f32 0.0, %v882
    %884 = vdwg.mxu0
    %v886 = vsel %vm82, %v789, 0
    %888 = vmatpush.xpose.msra.mxu0 0.0
    %889 = vmatpush.xpose.msra.mxu0 0.0
    %890 = vmatpush.xpose.msra.mxu0 0.0
    %891 = vmatpush.xpose.msra.mxu0 0.0
    %892 = vmatpush.xpose.msra.mxu0 0.0
    %893 = vmatpush.xpose.msra.mxu0 0.0
    %894 = vmatpush.xpose.msra.mxu0 0.0
    %895 = vmatpush.xpose.msra.mxu0 0.0
    %896 = vmatpush.xpose.msra.mxu0 0.0
    %897 = vmatpush.xpose.msra.mxu0 0.0
    %898 = vmatpush.xpose.msra.mxu0 0.0
    %899 = vmatpush.xpose.msra.mxu0 0.0
    %900 = vmatpush.xpose.msra.mxu0 0.0
    %901 = vmatpush.xpose.msra.mxu0 0.0
    %902 = vmatpush.xpose.msra.mxu0 0.0
    %903 = vmatpush.xpose.msra.mxu0 %v886
    %904 = vmatmul.f32.gmra.mxu0 %v84
    %v905 = vpop.f32.mrf.mxu0
    %v906 = vadd.f32 0.0, %v905
    %907 = vdwg.mxu0
    %v909 = vsel %vm82, %v790, 0
    %911 = vmatpush.xpose.msra.mxu0 0.0
    %912 = vmatpush.xpose.msra.mxu0 0.0
    %913 = vmatpush.xpose.msra.mxu0 0.0
    %914 = vmatpush.xpose.msra.mxu0 0.0
    %915 = vmatpush.xpose.msra.mxu0 0.0
    %916 = vmatpush.xpose.msra.mxu0 0.0
    %917 = vmatpush.xpose.msra.mxu0 0.0
    %918 = vmatpush.xpose.msra.mxu0 0.0
    %919 = vmatpush.xpose.msra.mxu0 0.0
    %920 = vmatpush.xpose.msra.mxu0 0.0
    %921 = vmatpush.xpose.msra.mxu0 0.0
    %922 = vmatpush.xpose.msra.mxu0 0.0
    %923 = vmatpush.xpose.msra.mxu0 0.0
    %924 = vmatpush.xpose.msra.mxu0 0.0
    %925 = vmatpush.xpose.msra.mxu0 0.0
    %926 = vmatpush.xpose.msra.mxu0 %v909
    %927 = vmatmul.f32.gmra.mxu0 %v84
    %v928 = vpop.f32.mrf.mxu0
    %v929 = vadd.f32 0.0, %v928
    %930 = vdwg.mxu0
    %v932 = vsel %vm82, %v791, 0
    %934 = vmatpush.xpose.msra.mxu0 0.0
    %935 = vmatpush.xpose.msra.mxu0 0.0
    %936 = vmatpush.xpose.msra.mxu0 0.0
    %937 = vmatpush.xpose.msra.mxu0 0.0
    %938 = vmatpush.xpose.msra.mxu0 0.0
    %939 = vmatpush.xpose.msra.mxu0 0.0
    %940 = vmatpush.xpose.msra.mxu0 0.0
    %941 = vmatpush.xpose.msra.mxu0 0.0
    %942 = vmatpush.xpose.msra.mxu0 0.0
    %943 = vmatpush.xpose.msra.mxu0 0.0
    %944 = vmatpush.xpose.msra.mxu0 0.0
    %945 = vmatpush.xpose.msra.mxu0 0.0
    %946 = vmatpush.xpose.msra.mxu0 0.0
    %947 = vmatpush.xpose.msra.mxu0 0.0
    %948 = vmatpush.xpose.msra.mxu0 0.0
    %949 = vmatpush.xpose.msra.mxu0 %v932
    %950 = vmatmul.f32.gmra.mxu0 %v84
    %v951 = vpop.f32.mrf.mxu0
    %v952 = vadd.f32 0.0, %v951
    %953 = vdwg.mxu0
    %v955 = vsel %vm82, %v792, 0
    %957 = vmatpush.xpose.msra.mxu0 0.0
    %958 = vmatpush.xpose.msra.mxu0 0.0
    %959 = vmatpush.xpose.msra.mxu0 0.0
    %960 = vmatpush.xpose.msra.mxu0 0.0
    %961 = vmatpush.xpose.msra.mxu0 0.0
    %962 = vmatpush.xpose.msra.mxu0 0.0
    %963 = vmatpush.xpose.msra.mxu0 0.0
    %964 = vmatpush.xpose.msra.mxu0 0.0
    %965 = vmatpush.xpose.msra.mxu0 0.0
    %966 = vmatpush.xpose.msra.mxu0 0.0
    %967 = vmatpush.xpose.msra.mxu0 0.0
    %968 = vmatpush.xpose.msra.mxu0 0.0
    %969 = vmatpush.xpose.msra.mxu0 0.0
    %970 = vmatpush.xpose.msra.mxu0 0.0
    %971 = vmatpush.xpose.msra.mxu0 0.0
    %972 = vmatpush.xpose.msra.mxu0 %v955
    %973 = vmatmul.f32.gmra.mxu0 %v84
    %v974 = vpop.f32.mrf.mxu0
    %v975 = vadd.f32 0.0, %v974
    %976 = vdwg.mxu0
    %977 = vmatpush.xpose.msra.mxu0 0.0
    %978 = vmatpush.xpose.msra.mxu0 0.0
    %979 = vmatpush.xpose.msra.mxu0 0.0
    %980 = vmatpush.xpose.msra.mxu0 0.0
    %981 = vmatpush.xpose.msra.mxu0 0.0
    %982 = vmatpush.xpose.msra.mxu0 0.0
    %983 = vmatpush.xpose.msra.mxu0 0.0
    %984 = vmatpush.xpose.msra.mxu0 0.0
    %985 = vmatpush.xpose.msra.mxu0 0.0
    %986 = vmatpush.xpose.msra.mxu0 0.0
    %987 = vmatpush.xpose.msra.mxu0 0.0
    %988 = vmatpush.xpose.msra.mxu0 0.0
    %989 = vmatpush.xpose.msra.mxu0 0.0
    %990 = vmatpush.xpose.msra.mxu0 0.0
    %991 = vmatpush.xpose.msra.mxu0 0.0
    %992 = vmatpush.xpose.msra.mxu0 %v794
    %993 = vmatmul.f32.gmra.mxu0 %v271
    %v994 = vpop.f32.mrf.mxu0
    %v995 = vadd.f32 0.0, %v994
    %996 = vdwg.mxu0
    %997 = vmatpush.xpose.msra.mxu0 0.0
    %998 = vmatpush.xpose.msra.mxu0 0.0
    %999 = vmatpush.xpose.msra.mxu0 0.0
    %1000 = vmatpush.xpose.msra.mxu0 0.0
    %1001 = vmatpush.xpose.msra.mxu0 0.0
    %1002 = vmatpush.xpose.msra.mxu0 0.0
    %1003 = vmatpush.xpose.msra.mxu0 0.0
    %1004 = vmatpush.xpose.msra.mxu0 0.0
    %1005 = vmatpush.xpose.msra.mxu0 0.0
    %1006 = vmatpush.xpose.msra.mxu0 0.0
    %1007 = vmatpush.xpose.msra.mxu0 0.0
    %1008 = vmatpush.xpose.msra.mxu0 0.0
    %1009 = vmatpush.xpose.msra.mxu0 0.0
    %1010 = vmatpush.xpose.msra.mxu0 0.0
    %1011 = vmatpush.xpose.msra.mxu0 0.0
    %1012 = vmatpush.xpose.msra.mxu0 %v817
    %1013 = vmatmul.f32.gmra.mxu0 %v271
    %v1014 = vpop.f32.mrf.mxu0
    %v1015 = vadd.f32 0.0, %v1014
    %1016 = vdwg.mxu0
    %1017 = vmatpush.xpose.msra.mxu0 0.0
    %1018 = vmatpush.xpose.msra.mxu0 0.0
    %1019 = vmatpush.xpose.msra.mxu0 0.0
    %1020 = vmatpush.xpose.msra.mxu0 0.0
    %1021 = vmatpush.xpose.msra.mxu0 0.0
    %1022 = vmatpush.xpose.msra.mxu0 0.0
    %1023 = vmatpush.xpose.msra.mxu0 0.0
    %1024 = vmatpush.xpose.msra.mxu0 0.0
    %1025 = vmatpush.xpose.msra.mxu0 0.0
    %1026 = vmatpush.xpose.msra.mxu0 0.0
    %1027 = vmatpush.xpose.msra.mxu0 0.0
    %1028 = vmatpush.xpose.msra.mxu0 0.0
    %1029 = vmatpush.xpose.msra.mxu0 0.0
    %1030 = vmatpush.xpose.msra.mxu0 0.0
    %1031 = vmatpush.xpose.msra.mxu0 0.0
    %1032 = vmatpush.xpose.msra.mxu0 %v840
    %1033 = vmatmul.f32.gmra.mxu0 %v271
    %v1034 = vpop.f32.mrf.mxu0
    %v1035 = vadd.f32 0.0, %v1034
    %1036 = vdwg.mxu0
    %1037 = vmatpush.xpose.msra.mxu0 0.0
    %1038 = vmatpush.xpose.msra.mxu0 0.0
    %1039 = vmatpush.xpose.msra.mxu0 0.0
    %1040 = vmatpush.xpose.msra.mxu0 0.0
    %1041 = vmatpush.xpose.msra.mxu0 0.0
    %1042 = vmatpush.xpose.msra.mxu0 0.0
    %1043 = vmatpush.xpose.msra.mxu0 0.0
    %1044 = vmatpush.xpose.msra.mxu0 0.0
    %1045 = vmatpush.xpose.msra.mxu0 0.0
    %1046 = vmatpush.xpose.msra.mxu0 0.0
    %1047 = vmatpush.xpose.msra.mxu0 0.0
    %1048 = vmatpush.xpose.msra.mxu0 0.0
    %1049 = vmatpush.xpose.msra.mxu0 0.0
    %1050 = vmatpush.xpose.msra.mxu0 0.0
    %1051 = vmatpush.xpose.msra.mxu0 0.0
    %1052 = vmatpush.xpose.msra.mxu0 %v863
    %1053 = vmatmul.f32.gmra.mxu0 %v271
    %v1054 = vpop.f32.mrf.mxu0
    %v1055 = vadd.f32 0.0, %v1054
    %1056 = vdwg.mxu0
    %1057 = vmatpush.xpose.msra.mxu0 0.0
    %1058 = vmatpush.xpose.msra.mxu0 0.0
    %1059 = vmatpush.xpose.msra.mxu0 0.0
    %1060 = vmatpush.xpose.msra.mxu0 0.0
    %1061 = vmatpush.xpose.msra.mxu0 0.0
    %1062 = vmatpush.xpose.msra.mxu0 0.0
    %1063 = vmatpush.xpose.msra.mxu0 0.0
    %1064 = vmatpush.xpose.msra.mxu0 0.0
    %1065 = vmatpush.xpose.msra.mxu0 0.0
    %1066 = vmatpush.xpose.msra.mxu0 0.0
    %1067 = vmatpush.xpose.msra.mxu0 0.0
    %1068 = vmatpush.xpose.msra.mxu0 0.0
    %1069 = vmatpush.xpose.msra.mxu0 0.0
    %1070 = vmatpush.xpose.msra.mxu0 0.0
    %1071 = vmatpush.xpose.msra.mxu0 0.0
    %1072 = vmatpush.xpose.msra.mxu0 %v886
    %1073 = vmatmul.f32.gmra.mxu0 %v271
    %v1074 = vpop.f32.mrf.mxu0
    %v1075 = vadd.f32 0.0, %v1074
    %1076 = vdwg.mxu0
    %1077 = vmatpush.xpose.msra.mxu0 0.0
    %1078 = vmatpush.xpose.msra.mxu0 0.0
    %1079 = vmatpush.xpose.msra.mxu0 0.0
    %1080 = vmatpush.xpose.msra.mxu0 0.0
    %1081 = vmatpush.xpose.msra.mxu0 0.0
    %1082 = vmatpush.xpose.msra.mxu0 0.0
    %1083 = vmatpush.xpose.msra.mxu0 0.0
    %1084 = vmatpush.xpose.msra.mxu0 0.0
    %1085 = vmatpush.xpose.msra.mxu0 0.0
    %1086 = vmatpush.xpose.msra.mxu0 0.0
    %1087 = vmatpush.xpose.msra.mxu0 0.0
    %1088 = vmatpush.xpose.msra.mxu0 0.0
    %1089 = vmatpush.xpose.msra.mxu0 0.0
    %1090 = vmatpush.xpose.msra.mxu0 0.0
    %1091 = vmatpush.xpose.msra.mxu0 0.0
    %1092 = vmatpush.xpose.msra.mxu0 %v909
    %1093 = vmatmul.f32.gmra.mxu0 %v271
    %v1094 = vpop.f32.mrf.mxu0
    %v1095 = vadd.f32 0.0, %v1094
    %1096 = vdwg.mxu0
    %1097 = vmatpush.xpose.msra.mxu0 0.0
    %1098 = vmatpush.xpose.msra.mxu0 0.0
    %1099 = vmatpush.xpose.msra.mxu0 0.0
    %1100 = vmatpush.xpose.msra.mxu0 0.0
    %1101 = vmatpush.xpose.msra.mxu0 0.0
    %1102 = vmatpush.xpose.msra.mxu0 0.0
    %1103 = vmatpush.xpose.msra.mxu0 0.0
    %1104 = vmatpush.xpose.msra.mxu0 0.0
    %1105 = vmatpush.xpose.msra.mxu0 0.0
    %1106 = vmatpush.xpose.msra.mxu0 0.0
    %1107 = vmatpush.xpose.msra.mxu0 0.0
    %1108 = vmatpush.xpose.msra.mxu0 0.0
    %1109 = vmatpush.xpose.msra.mxu0 0.0
    %1110 = vmatpush.xpose.msra.mxu0 0.0
    %1111 = vmatpush.xpose.msra.mxu0 0.0
    %1112 = vmatpush.xpose.msra.mxu0 %v932
    %1113 = vmatmul.f32.gmra.mxu0 %v271
    %v1114 = vpop.f32.mrf.mxu0
    %v1115 = vadd.f32 0.0, %v1114
    %1116 = vdwg.mxu0
    %1117 = vmatpush.xpose.msra.mxu0 0.0
    %1118 = vmatpush.xpose.msra.mxu0 0.0
    %1119 = vmatpush.xpose.msra.mxu0 0.0
    %1120 = vmatpush.xpose.msra.mxu0 0.0
    %1121 = vmatpush.xpose.msra.mxu0 0.0
    %1122 = vmatpush.xpose.msra.mxu0 0.0
    %1123 = vmatpush.xpose.msra.mxu0 0.0
    %1124 = vmatpush.xpose.msra.mxu0 0.0
    %1125 = vmatpush.xpose.msra.mxu0 0.0
    %1126 = vmatpush.xpose.msra.mxu0 0.0
    %1127 = vmatpush.xpose.msra.mxu0 0.0
    %1128 = vmatpush.xpose.msra.mxu0 0.0
    %1129 = vmatpush.xpose.msra.mxu0 0.0
    %1130 = vmatpush.xpose.msra.mxu0 0.0
    %1131 = vmatpush.xpose.msra.mxu0 0.0
    %1132 = vmatpush.xpose.msra.mxu0 %v955
    %1133 = vmatmul.f32.gmra.mxu0 %v271
    %v1134 = vpop.f32.mrf.mxu0
    %v1135 = vadd.f32 0.0, %v1134
    %1136 = vdwg.mxu0
    %vm1137 = vcmask 31744
    %v1139 = vsel %vm1137, %v107, 0
    %v1142 = vsel %vm1137, %v462, 0
    %1144 = vmatpush.xpose.msra.mxu0 0.0
    %1145 = vmatpush.xpose.msra.mxu0 0.0
    %1146 = vmatpush.xpose.msra.mxu0 0.0
    %1147 = vmatpush.xpose.msra.mxu0 0.0
    %1148 = vmatpush.xpose.msra.mxu0 0.0
    %1149 = vmatpush.xpose.msra.mxu0 0.0
    %1150 = vmatpush.xpose.msra.mxu0 0.0
    %1151 = vmatpush.xpose.msra.mxu0 0.0
    %1152 = vmatpush.xpose.msra.mxu0 0.0
    %1153 = vmatpush.xpose.msra.mxu0 0.0
    %1154 = vmatpush.xpose.msra.mxu0 0.0
    %1155 = vmatpush.xpose.msra.mxu0 0.0
    %1156 = vmatpush.xpose.msra.mxu0 0.0
    %1157 = vmatpush.xpose.msra.mxu0 0.0
    %1158 = vmatpush.xpose.msra.mxu0 0.0
    %1159 = vmatpush.xpose.msra.mxu0 %v1142
    %1160 = vmatmul.f32.gmra.mxu0 %v1139
    %v1161 = vpop.f32.mrf.mxu0
    %v1162 = vadd.f32 0.0, %v1161
    %1163 = vdwg.mxu0
    %v1165 = vsel %vm1137, %v130, 0
    %v1168 = vsel %vm1137, %v485, 0
    %1170 = vmatpush.xpose.msra.mxu0 0.0
    %1171 = vmatpush.xpose.msra.mxu0 0.0
    %1172 = vmatpush.xpose.msra.mxu0 0.0
    %1173 = vmatpush.xpose.msra.mxu0 0.0
    %1174 = vmatpush.xpose.msra.mxu0 0.0
    %1175 = vmatpush.xpose.msra.mxu0 0.0
    %1176 = vmatpush.xpose.msra.mxu0 0.0
    %1177 = vmatpush.xpose.msra.mxu0 0.0
    %1178 = vmatpush.xpose.msra.mxu0 0.0
    %1179 = vmatpush.xpose.msra.mxu0 0.0
    %1180 = vmatpush.xpose.msra.mxu0 0.0
    %1181 = vmatpush.xpose.msra.mxu0 0.0
    %1182 = vmatpush.xpose.msra.mxu0 0.0
    %1183 = vmatpush.xpose.msra.mxu0 0.0
    %1184 = vmatpush.xpose.msra.mxu0 0.0
    %1185 = vmatpush.xpose.msra.mxu0 %v1168
    %1186 = vmatmul.f32.gmra.mxu0 %v1165
    %v1187 = vpop.f32.mrf.mxu0
    %v1188 = vadd.f32 0.0, %v1187
    %1189 = vdwg.mxu0
    %v1191 = vsel %vm1137, %v153, 0
    %v1194 = vsel %vm1137, %v508, 0
    %1196 = vmatpush.xpose.msra.mxu0 0.0
    %1197 = vmatpush.xpose.msra.mxu0 0.0
    %1198 = vmatpush.xpose.msra.mxu0 0.0
    %1199 = vmatpush.xpose.msra.mxu0 0.0
    %1200 = vmatpush.xpose.msra.mxu0 0.0
    %1201 = vmatpush.xpose.msra.mxu0 0.0
    %1202 = vmatpush.xpose.msra.mxu0 0.0
    %1203 = vmatpush.xpose.msra.mxu0 0.0
    %1204 = vmatpush.xpose.msra.mxu0 0.0
    %1205 = vmatpush.xpose.msra.mxu0 0.0
    %1206 = vmatpush.xpose.msra.mxu0 0.0
    %1207 = vmatpush.xpose.msra.mxu0 0.0
    %1208 = vmatpush.xpose.msra.mxu0 0.0
    %1209 = vmatpush.xpose.msra.mxu0 0.0
    %1210 = vmatpush.xpose.msra.mxu0 0.0
    %1211 = vmatpush.xpose.msra.mxu0 %v1194
    %1212 = vmatmul.f32.gmra.mxu0 %v1191
    %v1213 = vpop.f32.mrf.mxu0
    %v1214 = vadd.f32 0.0, %v1213
    %1215 = vdwg.mxu0
    %v1217 = vsel %vm1137, %v176, 0
    %v1220 = vsel %vm1137, %v531, 0
    %1222 = vmatpush.xpose.msra.mxu0 0.0
    %1223 = vmatpush.xpose.msra.mxu0 0.0
    %1224 = vmatpush.xpose.msra.mxu0 0.0
    %1225 = vmatpush.xpose.msra.mxu0 0.0
    %1226 = vmatpush.xpose.msra.mxu0 0.0
    %1227 = vmatpush.xpose.msra.mxu0 0.0
    %1228 = vmatpush.xpose.msra.mxu0 0.0
    %1229 = vmatpush.xpose.msra.mxu0 0.0
    %1230 = vmatpush.xpose.msra.mxu0 0.0
    %1231 = vmatpush.xpose.msra.mxu0 0.0
    %1232 = vmatpush.xpose.msra.mxu0 0.0
    %1233 = vmatpush.xpose.msra.mxu0 0.0
    %1234 = vmatpush.xpose.msra.mxu0 0.0
    %1235 = vmatpush.xpose.msra.mxu0 0.0
    %1236 = vmatpush.xpose.msra.mxu0 0.0
    %1237 = vmatpush.xpose.msra.mxu0 %v1220
    %1238 = vmatmul.f32.gmra.mxu0 %v1217
    %v1239 = vpop.f32.mrf.mxu0
    %v1240 = vadd.f32 0.0, %v1239
    %1241 = vdwg.mxu0
    %v1243 = vsel %vm1137, %v199, 0
    %v1246 = vsel %vm1137, %v554, 0
    %1248 = vmatpush.xpose.msra.mxu0 0.0
    %1249 = vmatpush.xpose.msra.mxu0 0.0
    %1250 = vmatpush.xpose.msra.mxu0 0.0
    %1251 = vmatpush.xpose.msra.mxu0 0.0
    %1252 = vmatpush.xpose.msra.mxu0 0.0
    %1253 = vmatpush.xpose.msra.mxu0 0.0
    %1254 = vmatpush.xpose.msra.mxu0 0.0
    %1255 = vmatpush.xpose.msra.mxu0 0.0
    %1256 = vmatpush.xpose.msra.mxu0 0.0
    %1257 = vmatpush.xpose.msra.mxu0 0.0
    %1258 = vmatpush.xpose.msra.mxu0 0.0
    %1259 = vmatpush.xpose.msra.mxu0 0.0
    %1260 = vmatpush.xpose.msra.mxu0 0.0
    %1261 = vmatpush.xpose.msra.mxu0 0.0
    %1262 = vmatpush.xpose.msra.mxu0 0.0
    %1263 = vmatpush.xpose.msra.mxu0 %v1246
    %1264 = vmatmul.f32.gmra.mxu0 %v1243
    %v1265 = vpop.f32.mrf.mxu0
    %v1266 = vadd.f32 0.0, %v1265
    %1267 = vdwg.mxu0
    %v1269 = vsel %vm1137, %v222, 0
    %v1272 = vsel %vm1137, %v577, 0
    %1274 = vmatpush.xpose.msra.mxu0 0.0
    %1275 = vmatpush.xpose.msra.mxu0 0.0
    %1276 = vmatpush.xpose.msra.mxu0 0.0
    %1277 = vmatpush.xpose.msra.mxu0 0.0
    %1278 = vmatpush.xpose.msra.mxu0 0.0
    %1279 = vmatpush.xpose.msra.mxu0 0.0
    %1280 = vmatpush.xpose.msra.mxu0 0.0
    %1281 = vmatpush.xpose.msra.mxu0 0.0
    %1282 = vmatpush.xpose.msra.mxu0 0.0
    %1283 = vmatpush.xpose.msra.mxu0 0.0
    %1284 = vmatpush.xpose.msra.mxu0 0.0
    %1285 = vmatpush.xpose.msra.mxu0 0.0
    %1286 = vmatpush.xpose.msra.mxu0 0.0
    %1287 = vmatpush.xpose.msra.mxu0 0.0
    %1288 = vmatpush.xpose.msra.mxu0 0.0
    %1289 = vmatpush.xpose.msra.mxu0 %v1272
    %1290 = vmatmul.f32.gmra.mxu0 %v1269
    %v1291 = vpop.f32.mrf.mxu0
    %v1292 = vadd.f32 0.0, %v1291
    %1293 = vdwg.mxu0
    %v1295 = vsel %vm1137, %v245, 0
    %v1298 = vsel %vm1137, %v600, 0
    %1300 = vmatpush.xpose.msra.mxu0 0.0
    %1301 = vmatpush.xpose.msra.mxu0 0.0
    %1302 = vmatpush.xpose.msra.mxu0 0.0
    %1303 = vmatpush.xpose.msra.mxu0 0.0
    %1304 = vmatpush.xpose.msra.mxu0 0.0
    %1305 = vmatpush.xpose.msra.mxu0 0.0
    %1306 = vmatpush.xpose.msra.mxu0 0.0
    %1307 = vmatpush.xpose.msra.mxu0 0.0
    %1308 = vmatpush.xpose.msra.mxu0 0.0
    %1309 = vmatpush.xpose.msra.mxu0 0.0
    %1310 = vmatpush.xpose.msra.mxu0 0.0
    %1311 = vmatpush.xpose.msra.mxu0 0.0
    %1312 = vmatpush.xpose.msra.mxu0 0.0
    %1313 = vmatpush.xpose.msra.mxu0 0.0
    %1314 = vmatpush.xpose.msra.mxu0 0.0
    %1315 = vmatpush.xpose.msra.mxu0 %v1298
    %1316 = vmatmul.f32.gmra.mxu0 %v1295
    %v1317 = vpop.f32.mrf.mxu0
    %v1318 = vadd.f32 0.0, %v1317
    %1319 = vdwg.mxu0
    %v1321 = vsel %vm1137, %v268, 0
    %v1324 = vsel %vm1137, %v623, 0
    %1326 = vmatpush.xpose.msra.mxu0 0.0
    %1327 = vmatpush.xpose.msra.mxu0 0.0
    %1328 = vmatpush.xpose.msra.mxu0 0.0
    %1329 = vmatpush.xpose.msra.mxu0 0.0
    %1330 = vmatpush.xpose.msra.mxu0 0.0
    %1331 = vmatpush.xpose.msra.mxu0 0.0
    %1332 = vmatpush.xpose.msra.mxu0 0.0
    %1333 = vmatpush.xpose.msra.mxu0 0.0
    %1334 = vmatpush.xpose.msra.mxu0 0.0
    %1335 = vmatpush.xpose.msra.mxu0 0.0
    %1336 = vmatpush.xpose.msra.mxu0 0.0
    %1337 = vmatpush.xpose.msra.mxu0 0.0
    %1338 = vmatpush.xpose.msra.mxu0 0.0
    %1339 = vmatpush.xpose.msra.mxu0 0.0
    %1340 = vmatpush.xpose.msra.mxu0 0.0
    %1341 = vmatpush.xpose.msra.mxu0 %v1324
    %1342 = vmatmul.f32.gmra.mxu0 %v1321
    %v1343 = vpop.f32.mrf.mxu0
    %v1344 = vadd.f32 0.0, %v1343
    %1345 = vdwg.mxu0
    %v1347 = vsel %vm1137, %v291, 0
    %v1350 = vsel %vm1137, %v643, 0
    %1352 = vmatpush.xpose.msra.mxu0 0.0
    %1353 = vmatpush.xpose.msra.mxu0 0.0
    %1354 = vmatpush.xpose.msra.mxu0 0.0
    %1355 = vmatpush.xpose.msra.mxu0 0.0
    %1356 = vmatpush.xpose.msra.mxu0 0.0
    %1357 = vmatpush.xpose.msra.mxu0 0.0
    %1358 = vmatpush.xpose.msra.mxu0 0.0
    %1359 = vmatpush.xpose.msra.mxu0 0.0
    %1360 = vmatpush.xpose.msra.mxu0 0.0
    %1361 = vmatpush.xpose.msra.mxu0 0.0
    %1362 = vmatpush.xpose.msra.mxu0 0.0
    %1363 = vmatpush.xpose.msra.mxu0 0.0
    %1364 = vmatpush.xpose.msra.mxu0 0.0
    %1365 = vmatpush.xpose.msra.mxu0 0.0
    %1366 = vmatpush.xpose.msra.mxu0 0.0
    %1367 = vmatpush.xpose.msra.mxu0 %v1350
    %1368 = vmatmul.f32.gmra.mxu0 %v1347
    %v1369 = vpop.f32.mrf.mxu0
    %v1370 = vadd.f32 0.0, %v1369
    %1371 = vdwg.mxu0
    %v1373 = vsel %vm1137, %v311, 0
    %v1376 = vsel %vm1137, %v663, 0
    %1378 = vmatpush.xpose.msra.mxu0 0.0
    %1379 = vmatpush.xpose.msra.mxu0 0.0
    %1380 = vmatpush.xpose.msra.mxu0 0.0
    %1381 = vmatpush.xpose.msra.mxu0 0.0
    %1382 = vmatpush.xpose.msra.mxu0 0.0
    %1383 = vmatpush.xpose.msra.mxu0 0.0
    %1384 = vmatpush.xpose.msra.mxu0 0.0
    %1385 = vmatpush.xpose.msra.mxu0 0.0
    %1386 = vmatpush.xpose.msra.mxu0 0.0
    %1387 = vmatpush.xpose.msra.mxu0 0.0
    %1388 = vmatpush.xpose.msra.mxu0 0.0
    %1389 = vmatpush.xpose.msra.mxu0 0.0
    %1390 = vmatpush.xpose.msra.mxu0 0.0
    %1391 = vmatpush.xpose.msra.mxu0 0.0
    %1392 = vmatpush.xpose.msra.mxu0 0.0
    %1393 = vmatpush.xpose.msra.mxu0 %v1376
    %1394 = vmatmul.f32.gmra.mxu0 %v1373
    %v1395 = vpop.f32.mrf.mxu0
    %v1396 = vadd.f32 0.0, %v1395
    %1397 = vdwg.mxu0
    %v1399 = vsel %vm1137, %v331, 0
    %v1402 = vsel %vm1137, %v683, 0
    %1404 = vmatpush.xpose.msra.mxu0 0.0
    %1405 = vmatpush.xpose.msra.mxu0 0.0
    %1406 = vmatpush.xpose.msra.mxu0 0.0
    %1407 = vmatpush.xpose.msra.mxu0 0.0
    %1408 = vmatpush.xpose.msra.mxu0 0.0
    %1409 = vmatpush.xpose.msra.mxu0 0.0
    %1410 = vmatpush.xpose.msra.mxu0 0.0
    %1411 = vmatpush.xpose.msra.mxu0 0.0
    %1412 = vmatpush.xpose.msra.mxu0 0.0
    %1413 = vmatpush.xpose.msra.mxu0 0.0
    %1414 = vmatpush.xpose.msra.mxu0 0.0
    %1415 = vmatpush.xpose.msra.mxu0 0.0
    %1416 = vmatpush.xpose.msra.mxu0 0.0
    %1417 = vmatpush.xpose.msra.mxu0 0.0
    %1418 = vmatpush.xpose.msra.mxu0 0.0
    %1419 = vmatpush.xpose.msra.mxu0 %v1402
    %1420 = vmatmul.f32.gmra.mxu0 %v1399
    %v1421 = vpop.f32.mrf.mxu0
    %v1422 = vadd.f32 0.0, %v1421
    %1423 = vdwg.mxu0
    %v1425 = vsel %vm1137, %v351, 0
    %v1428 = vsel %vm1137, %v703, 0
    %1430 = vmatpush.xpose.msra.mxu0 0.0
    %1431 = vmatpush.xpose.msra.mxu0 0.0
    %1432 = vmatpush.xpose.msra.mxu0 0.0
    %1433 = vmatpush.xpose.msra.mxu0 0.0
    %1434 = vmatpush.xpose.msra.mxu0 0.0
    %1435 = vmatpush.xpose.msra.mxu0 0.0
    %1436 = vmatpush.xpose.msra.mxu0 0.0
    %1437 = vmatpush.xpose.msra.mxu0 0.0
    %1438 = vmatpush.xpose.msra.mxu0 0.0
    %1439 = vmatpush.xpose.msra.mxu0 0.0
    %1440 = vmatpush.xpose.msra.mxu0 0.0
    %1441 = vmatpush.xpose.msra.mxu0 0.0
    %1442 = vmatpush.xpose.msra.mxu0 0.0
    %1443 = vmatpush.xpose.msra.mxu0 0.0
    %1444 = vmatpush.xpose.msra.mxu0 0.0
    %1445 = vmatpush.xpose.msra.mxu0 %v1428
    %1446 = vmatmul.f32.gmra.mxu0 %v1425
    %v1447 = vpop.f32.mrf.mxu0
    %v1448 = vadd.f32 0.0, %v1447
    %1449 = vdwg.mxu0
    %v1451 = vsel %vm1137, %v371, 0
    %v1454 = vsel %vm1137, %v723, 0
    %1456 = vmatpush.xpose.msra.mxu0 0.0
    %1457 = vmatpush.xpose.msra.mxu0 0.0
    %1458 = vmatpush.xpose.msra.mxu0 0.0
    %1459 = vmatpush.xpose.msra.mxu0 0.0
    %1460 = vmatpush.xpose.msra.mxu0 0.0
    %1461 = vmatpush.xpose.msra.mxu0 0.0
    %1462 = vmatpush.xpose.msra.mxu0 0.0
    %1463 = vmatpush.xpose.msra.mxu0 0.0
    %1464 = vmatpush.xpose.msra.mxu0 0.0
    %1465 = vmatpush.xpose.msra.mxu0 0.0
    %1466 = vmatpush.xpose.msra.mxu0 0.0
    %1467 = vmatpush.xpose.msra.mxu0 0.0
    %1468 = vmatpush.xpose.msra.mxu0 0.0
    %1469 = vmatpush.xpose.msra.mxu0 0.0
    %1470 = vmatpush.xpose.msra.mxu0 0.0
    %1471 = vmatpush.xpose.msra.mxu0 %v1454
    %1472 = vmatmul.f32.gmra.mxu0 %v1451
    %v1473 = vpop.f32.mrf.mxu0
    %v1474 = vadd.f32 0.0, %v1473
    %1475 = vdwg.mxu0
    %v1477 = vsel %vm1137, %v391, 0
    %v1480 = vsel %vm1137, %v743, 0
    %1482 = vmatpush.xpose.msra.mxu0 0.0
    %1483 = vmatpush.xpose.msra.mxu0 0.0
    %1484 = vmatpush.xpose.msra.mxu0 0.0
    %1485 = vmatpush.xpose.msra.mxu0 0.0
    %1486 = vmatpush.xpose.msra.mxu0 0.0
    %1487 = vmatpush.xpose.msra.mxu0 0.0
    %1488 = vmatpush.xpose.msra.mxu0 0.0
    %1489 = vmatpush.xpose.msra.mxu0 0.0
    %1490 = vmatpush.xpose.msra.mxu0 0.0
    %1491 = vmatpush.xpose.msra.mxu0 0.0
    %1492 = vmatpush.xpose.msra.mxu0 0.0
    %1493 = vmatpush.xpose.msra.mxu0 0.0
    %1494 = vmatpush.xpose.msra.mxu0 0.0
    %1495 = vmatpush.xpose.msra.mxu0 0.0
    %1496 = vmatpush.xpose.msra.mxu0 0.0
    %1497 = vmatpush.xpose.msra.mxu0 %v1480
    %1498 = vmatmul.f32.gmra.mxu0 %v1477
    %v1499 = vpop.f32.mrf.mxu0
    %v1500 = vadd.f32 0.0, %v1499
    %1501 = vdwg.mxu0
    %v1503 = vsel %vm1137, %v411, 0
    %v1506 = vsel %vm1137, %v763, 0
    %1508 = vmatpush.xpose.msra.mxu0 0.0
    %1509 = vmatpush.xpose.msra.mxu0 0.0
    %1510 = vmatpush.xpose.msra.mxu0 0.0
    %1511 = vmatpush.xpose.msra.mxu0 0.0
    %1512 = vmatpush.xpose.msra.mxu0 0.0
    %1513 = vmatpush.xpose.msra.mxu0 0.0
    %1514 = vmatpush.xpose.msra.mxu0 0.0
    %1515 = vmatpush.xpose.msra.mxu0 0.0
    %1516 = vmatpush.xpose.msra.mxu0 0.0
    %1517 = vmatpush.xpose.msra.mxu0 0.0
    %1518 = vmatpush.xpose.msra.mxu0 0.0
    %1519 = vmatpush.xpose.msra.mxu0 0.0
    %1520 = vmatpush.xpose.msra.mxu0 0.0
    %1521 = vmatpush.xpose.msra.mxu0 0.0
    %1522 = vmatpush.xpose.msra.mxu0 0.0
    %1523 = vmatpush.xpose.msra.mxu0 %v1506
    %1524 = vmatmul.f32.gmra.mxu0 %v1503
    %v1525 = vpop.f32.mrf.mxu0
    %v1526 = vadd.f32 0.0, %v1525
    %1527 = vdwg.mxu0
    %v1529 = vsel %vm1137, %v431, 0
    %v1532 = vsel %vm1137, %v783, 0
    %1534 = vmatpush.xpose.msra.mxu0 0.0
    %1535 = vmatpush.xpose.msra.mxu0 0.0
    %1536 = vmatpush.xpose.msra.mxu0 0.0
    %1537 = vmatpush.xpose.msra.mxu0 0.0
    %1538 = vmatpush.xpose.msra.mxu0 0.0
    %1539 = vmatpush.xpose.msra.mxu0 0.0
    %1540 = vmatpush.xpose.msra.mxu0 0.0
    %1541 = vmatpush.xpose.msra.mxu0 0.0
    %1542 = vmatpush.xpose.msra.mxu0 0.0
    %1543 = vmatpush.xpose.msra.mxu0 0.0
    %1544 = vmatpush.xpose.msra.mxu0 0.0
    %1545 = vmatpush.xpose.msra.mxu0 0.0
    %1546 = vmatpush.xpose.msra.mxu0 0.0
    %1547 = vmatpush.xpose.msra.mxu0 0.0
    %1548 = vmatpush.xpose.msra.mxu0 0.0
    %1549 = vmatpush.xpose.msra.mxu0 %v1532
    %1550 = vmatmul.f32.gmra.mxu0 %v1529
    %v1551 = vpop.f32.mrf.mxu0
    %v1552 = vadd.f32 0.0, %v1551
    %1553 = vdwg.mxu0
    %v1554 = vld [vmem:[#allocation5] sm:$0xff]
    %vm1555 = vcmp.eq.s32.totalorder %v1554, 0
    %v1556 = vmul.f32 %v1162, 0.5
    %v1557 = vmul.f32 %v1188, 0.5
    %v1558 = vmul.f32 %v1214, 0.5
    %v1559 = vmul.f32 %v1240, 0.5
    %v1560 = vmul.f32 %v1266, 0.5
    %v1561 = vmul.f32 %v1292, 0.5
    %v1562 = vmul.f32 %v1318, 0.5
    %v1563 = vmul.f32 %v1344, 0.5
    %v1564 = vmul.f32 %v1370, 0.5
    %v1565 = vmul.f32 %v1396, 0.5
    %v1566 = vmul.f32 %v1422, 0.5
    %v1567 = vmul.f32 %v1448, 0.5
    %v1568 = vmul.f32 %v1474, 0.5
    %v1569 = vmul.f32 %v1500, 0.5
    %v1570 = vmul.f32 %v1526, 0.5
    %v1571 = vmul.f32 %v1552, 0.5
    %v1572 = vsel %vm1555, 1, 0
    %vm1573 = vcmp.eq.s32.totalorder %v1572, 1
    %v1574 = vsel %vm1573, -1e+09, %v1556
    %v1575 = vsel %vm1573, -1e+09, %v1557
    %v1576 = vsel %vm1573, -1e+09, %v1558
    %v1577 = vsel %vm1573, -1e+09, %v1559
    %v1578 = vsel %vm1573, -1e+09, %v1560
    %v1579 = vsel %vm1573, -1e+09, %v1561
    %v1580 = vsel %vm1573, -1e+09, %v1562
    %v1581 = vsel %vm1573, -1e+09, %v1563
    %v1582 = vsel %vm1573, -1e+09, %v1564
    %v1583 = vsel %vm1573, -1e+09, %v1565
    %v1584 = vsel %vm1573, -1e+09, %v1566
    %v1585 = vsel %vm1573, -1e+09, %v1567
    %v1586 = vsel %vm1573, -1e+09, %v1568
    %v1587 = vsel %vm1573, -1e+09, %v1569
    %v1588 = vsel %vm1573, -1e+09, %v1570
    %v1589 = vsel %vm1573, -1e+09, %v1571
    %vm1590 = vcmask 64512
    %v1591 = vsel %vm1590, %v1574, -inf
    %1592 = vmax.xlane.f32.xlu0 %v1591
    %v1593 = vpop.xlane.xlu0 %1592
    %v1594 = vsel %vm1590, %v1575, -inf
    %1595 = vmax.xlane.f32.xlu0 %v1594
    %v1596 = vpop.xlane.xlu0 %1595
    %v1597 = vsel %vm1590, %v1576, -inf
    %1598 = vmax.xlane.f32.xlu0 %v1597
    %v1599 = vpop.xlane.xlu0 %1598
    %v1600 = vsel %vm1590, %v1577, -inf
    %1601 = vmax.xlane.f32.xlu0 %v1600
    %v1602 = vpop.xlane.xlu0 %1601
    %v1603 = vsel %vm1590, %v1578, -inf
    %1604 = vmax.xlane.f32.xlu0 %v1603
    %v1605 = vpop.xlane.xlu0 %1604
    %v1606 = vsel %vm1590, %v1579, -inf
    %1607 = vmax.xlane.f32.xlu0 %v1606
    %v1608 = vpop.xlane.xlu0 %1607
    %v1609 = vsel %vm1590, %v1580, -inf
    %1610 = vmax.xlane.f32.xlu0 %v1609
    %v1611 = vpop.xlane.xlu0 %1610
    %v1612 = vsel %vm1590, %v1581, -inf
    %1613 = vmax.xlane.f32.xlu0 %v1612
    %v1614 = vpop.xlane.xlu0 %1613
    %v1615 = vsel %vm1590, %v1582, -inf
    %1616 = vmax.xlane.f32.xlu0 %v1615
    %v1617 = vpop.xlane.xlu0 %1616
    %v1618 = vsel %vm1590, %v1583, -inf
    %1619 = vmax.xlane.f32.xlu0 %v1618
    %v1620 = vpop.xlane.xlu0 %1619
    %v1621 = vsel %vm1590, %v1584, -inf
    %1622 = vmax.xlane.f32.xlu0 %v1621
    %v1623 = vpop.xlane.xlu0 %1622
    %v1624 = vsel %vm1590, %v1585, -inf
    %1625 = vmax.xlane.f32.xlu0 %v1624
    %v1626 = vpop.xlane.xlu0 %1625
    %v1627 = vsel %vm1590, %v1586, -inf
    %1628 = vmax.xlane.f32.xlu0 %v1627
    %v1629 = vpop.xlane.xlu0 %1628
    %v1630 = vsel %vm1590, %v1587, -inf
    %1631 = vmax.xlane.f32.xlu0 %v1630
    %v1632 = vpop.xlane.xlu0 %1631
    %v1633 = vsel %vm1590, %v1588, -inf
    %1634 = vmax.xlane.f32.xlu0 %v1633
    %v1635 = vpop.xlane.xlu0 %1634
    %v1636 = vsel %vm1590, %v1589, -inf
    %1637 = vmax.xlane.f32.xlu0 %v1636
    %v1638 = vpop.xlane.xlu0 %1637
    %v1639 = vsub.f32 %v1574, %v1593
    %v1640 = vsub.f32 %v1575, %v1596
    %v1641 = vsub.f32 %v1576, %v1599
    %v1642 = vsub.f32 %v1577, %v1602
    %v1643 = vsub.f32 %v1578, %v1605
    %v1644 = vsub.f32 %v1579, %v1608
    %v1645 = vsub.f32 %v1580, %v1611
    %v1646 = vsub.f32 %v1581, %v1614
    %v1647 = vsub.f32 %v1582, %v1617
    %v1648 = vsub.f32 %v1583, %v1620
    %v1649 = vsub.f32 %v1584, %v1623
    %v1650 = vsub.f32 %v1585, %v1626
    %v1651 = vsub.f32 %v1586, %v1629
    %v1652 = vsub.f32 %v1587, %v1632
    %v1653 = vsub.f32 %v1588, %v1635
    %v1654 = vsub.f32 %v1589, %v1638
    %v1655 = vmul.f32 %v1639, 1.442695
    %v1656 = vpow.pop %v1655
    %v1657 = vmul.f32 %v1640, 1.442695
    %v1658 = vpow.pop %v1657
    %v1659 = vmul.f32 %v1641, 1.442695
    %v1660 = vpow.pop %v1659
    %v1661 = vmul.f32 %v1642, 1.442695
    %v1662 = vpow.pop %v1661
    %v1663 = vmul.f32 %v1643, 1.442695
    %v1664 = vpow.pop %v1663
    %v1665 = vmul.f32 %v1644, 1.442695
    %v1666 = vpow.pop %v1665
    %v1667 = vmul.f32 %v1645, 1.442695
    %v1668 = vpow.pop %v1667
    %v1669 = vmul.f32 %v1646, 1.442695
    %v1670 = vpow.pop %v1669
    %v1671 = vmul.f32 %v1647, 1.442695
    %v1672 = vpow.pop %v1671
    %v1673 = vmul.f32 %v1648, 1.442695
    %v1674 = vpow.pop %v1673
    %v1675 = vmul.f32 %v1649, 1.442695
    %v1676 = vpow.pop %v1675
    %v1677 = vmul.f32 %v1650, 1.442695
    %v1678 = vpow.pop %v1677
    %v1679 = vmul.f32 %v1651, 1.442695
    %v1680 = vpow.pop %v1679
    %v1681 = vmul.f32 %v1652, 1.442695
    %v1682 = vpow.pop %v1681
    %v1683 = vmul.f32 %v1653, 1.442695
    %v1684 = vpow.pop %v1683
    %v1685 = vmul.f32 %v1654, 1.442695
    %v1686 = vpow.pop %v1685
    %v1687 = vsel %vm1590, %v1656, 0.0
    %1688 = vadd.xlane.f32.xlu0 %v1687
    %v1689 = vpop.xlane.xlu0 %1688
    %v1690 = vsel %vm1590, %v1658, 0.0
    %1691 = vadd.xlane.f32.xlu0 %v1690
    %v1692 = vpop.xlane.xlu0 %1691
    %v1693 = vsel %vm1590, %v1660, 0.0
    %1694 = vadd.xlane.f32.xlu0 %v1693
    %v1695 = vpop.xlane.xlu0 %1694
    %v1696 = vsel %vm1590, %v1662, 0.0
    %1697 = vadd.xlane.f32.xlu0 %v1696
    %v1698 = vpop.xlane.xlu0 %1697
    %v1699 = vsel %vm1590, %v1664, 0.0
    %1700 = vadd.xlane.f32.xlu0 %v1699
    %v1701 = vpop.xlane.xlu0 %1700
    %v1702 = vsel %vm1590, %v1666, 0.0
    %1703 = vadd.xlane.f32.xlu0 %v1702
    %v1704 = vpop.xlane.xlu0 %1703
    %v1705 = vsel %vm1590, %v1668, 0.0
    %1706 = vadd.xlane.f32.xlu0 %v1705
    %v1707 = vpop.xlane.xlu0 %1706
    %v1708 = vsel %vm1590, %v1670, 0.0
    %1709 = vadd.xlane.f32.xlu0 %v1708
    %v1710 = vpop.xlane.xlu0 %1709
    %v1711 = vsel %vm1590, %v1672, 0.0
    %1712 = vadd.xlane.f32.xlu0 %v1711
    %v1713 = vpop.xlane.xlu0 %1712
    %v1714 = vsel %vm1590, %v1674, 0.0
    %1715 = vadd.xlane.f32.xlu0 %v1714
    %v1716 = vpop.xlane.xlu0 %1715
    %v1717 = vsel %vm1590, %v1676, 0.0
    %1718 = vadd.xlane.f32.xlu0 %v1717
    %v1719 = vpop.xlane.xlu0 %1718
    %v1720 = vsel %vm1590, %v1678, 0.0
    %1721 = vadd.xlane.f32.xlu0 %v1720
    %v1722 = vpop.xlane.xlu0 %1721
    %v1723 = vsel %vm1590, %v1680, 0.0
    %1724 = vadd.xlane.f32.xlu0 %v1723
    %v1725 = vpop.xlane.xlu0 %1724
    %v1726 = vsel %vm1590, %v1682, 0.0
    %1727 = vadd.xlane.f32.xlu0 %v1726
    %v1728 = vpop.xlane.xlu0 %1727
    %v1729 = vsel %vm1590, %v1684, 0.0
    %1730 = vadd.xlane.f32.xlu0 %v1729
    %v1731 = vpop.xlane.xlu0 %1730
    %v1732 = vsel %vm1590, %v1686, 0.0
    %1733 = vadd.xlane.f32.xlu0 %v1732
    %v1734 = vpop.xlane.xlu0 %1733
    %v1735 = vrcp.pop %v1689
    %v1736 = vrcp.pop %v1692
    %v1737 = vrcp.pop %v1695
    %v1738 = vrcp.pop %v1698
    %v1739 = vrcp.pop %v1701
    %v1740 = vrcp.pop %v1704
    %v1741 = vrcp.pop %v1707
    %v1742 = vrcp.pop %v1710
    %v1743 = vrcp.pop %v1713
    %v1744 = vrcp.pop %v1716
    %v1745 = vrcp.pop %v1719
    %v1746 = vrcp.pop %v1722
    %v1747 = vrcp.pop %v1725
    %v1748 = vrcp.pop %v1728
    %v1749 = vrcp.pop %v1731
    %v1750 = vrcp.pop %v1734
    %v1751 = vmul.f32 %v1656, %v1735
    %v1752 = vmul.f32 %v1658, %v1736
    %v1753 = vmul.f32 %v1660, %v1737
    %v1754 = vmul.f32 %v1662, %v1738
    %v1755 = vmul.f32 %v1664, %v1739
    %v1756 = vmul.f32 %v1666, %v1740
    %v1757 = vmul.f32 %v1668, %v1741
    %v1758 = vmul.f32 %v1670, %v1742
    %v1759 = vmul.f32 %v1672, %v1743
    %v1760 = vmul.f32 %v1674, %v1744
    %v1761 = vmul.f32 %v1676, %v1745
    %v1762 = vmul.f32 %v1678, %v1746
    %v1763 = vmul.f32 %v1680, %v1747
    %v1764 = vmul.f32 %v1682, %v1748
    %v1765 = vmul.f32 %v1684, %v1749
    %v1766 = vmul.f32 %v1686, %v1750
    %v1768 = vsel %vm1590, %v1751, 0
    %1770 = vmatpush.msra.mxu0 0.0
    %1771 = vmatpush.msra.mxu0 0.0
    %1772 = vmatpush.msra.mxu0 0.0
    %1773 = vmatpush.msra.mxu0 0.0
    %1774 = vmatpush.msra.mxu0 0.0
    %1775 = vmatpush.msra.mxu0 0.0
    %1776 = vmatpush.msra.mxu0 0.0
    %1777 = vmatpush.msra.mxu0 0.0
    %1778 = vmatpush.msra.mxu0 0.0
    %1779 = vmatpush.msra.mxu0 0.0
    %1780 = vmatpush.msra.mxu0 0.0
    %1781 = vmatpush.msra.mxu0 0.0
    %1782 = vmatpush.msra.mxu0 0.0
    %1783 = vmatpush.msra.mxu0 0.0
    %1784 = vmatpush.msra.mxu0 0.0
    %1785 = vmatpush.msra.mxu0 %v814
    %1786 = vmatmul.f32.gmra.mxu0 %v1768
    %v1787 = vpop.f32.mrf.mxu0
    %v1788 = vadd.f32 0.0, %v1787
    %1789 = vdwg.mxu0
    %v1791 = vsel %vm1590, %v1752, 0
    %1793 = vmatpush.msra.mxu0 0.0
    %1794 = vmatpush.msra.mxu0 0.0
    %1795 = vmatpush.msra.mxu0 0.0
    %1796 = vmatpush.msra.mxu0 0.0
    %1797 = vmatpush.msra.mxu0 0.0
    %1798 = vmatpush.msra.mxu0 0.0
    %1799 = vmatpush.msra.mxu0 0.0
    %1800 = vmatpush.msra.mxu0 0.0
    %1801 = vmatpush.msra.mxu0 0.0
    %1802 = vmatpush.msra.mxu0 0.0
    %1803 = vmatpush.msra.mxu0 0.0
    %1804 = vmatpush.msra.mxu0 0.0
    %1805 = vmatpush.msra.mxu0 0.0
    %1806 = vmatpush.msra.mxu0 0.0
    %1807 = vmatpush.msra.mxu0 0.0
    %1808 = vmatpush.msra.mxu0 %v837
    %1809 = vmatmul.f32.gmra.mxu0 %v1791
    %v1810 = vpop.f32.mrf.mxu0
    %v1811 = vadd.f32 0.0, %v1810
    %1812 = vdwg.mxu0
    %v1814 = vsel %vm1590, %v1753, 0
    %1816 = vmatpush.msra.mxu0 0.0
    %1817 = vmatpush.msra.mxu0 0.0
    %1818 = vmatpush.msra.mxu0 0.0
    %1819 = vmatpush.msra.mxu0 0.0
    %1820 = vmatpush.msra.mxu0 0.0
    %1821 = vmatpush.msra.mxu0 0.0
    %1822 = vmatpush.msra.mxu0 0.0
    %1823 = vmatpush.msra.mxu0 0.0
    %1824 = vmatpush.msra.mxu0 0.0
    %1825 = vmatpush.msra.mxu0 0.0
    %1826 = vmatpush.msra.mxu0 0.0
    %1827 = vmatpush.msra.mxu0 0.0
    %1828 = vmatpush.msra.mxu0 0.0
    %1829 = vmatpush.msra.mxu0 0.0
    %1830 = vmatpush.msra.mxu0 0.0
    %1831 = vmatpush.msra.mxu0 %v860
    %1832 = vmatmul.f32.gmra.mxu0 %v1814
    %v1833 = vpop.f32.mrf.mxu0
    %v1834 = vadd.f32 0.0, %v1833
    %1835 = vdwg.mxu0
    %v1837 = vsel %vm1590, %v1754, 0
    %1839 = vmatpush.msra.mxu0 0.0
    %1840 = vmatpush.msra.mxu0 0.0
    %1841 = vmatpush.msra.mxu0 0.0
    %1842 = vmatpush.msra.mxu0 0.0
    %1843 = vmatpush.msra.mxu0 0.0
    %1844 = vmatpush.msra.mxu0 0.0
    %1845 = vmatpush.msra.mxu0 0.0
    %1846 = vmatpush.msra.mxu0 0.0
    %1847 = vmatpush.msra.mxu0 0.0
    %1848 = vmatpush.msra.mxu0 0.0
    %1849 = vmatpush.msra.mxu0 0.0
    %1850 = vmatpush.msra.mxu0 0.0
    %1851 = vmatpush.msra.mxu0 0.0
    %1852 = vmatpush.msra.mxu0 0.0
    %1853 = vmatpush.msra.mxu0 0.0
    %1854 = vmatpush.msra.mxu0 %v883
    %1855 = vmatmul.f32.gmra.mxu0 %v1837
    %v1856 = vpop.f32.mrf.mxu0
    %v1857 = vadd.f32 0.0, %v1856
    %1858 = vdwg.mxu0
    %v1860 = vsel %vm1590, %v1755, 0
    %1862 = vmatpush.msra.mxu0 0.0
    %1863 = vmatpush.msra.mxu0 0.0
    %1864 = vmatpush.msra.mxu0 0.0
    %1865 = vmatpush.msra.mxu0 0.0
    %1866 = vmatpush.msra.mxu0 0.0
    %1867 = vmatpush.msra.mxu0 0.0
    %1868 = vmatpush.msra.mxu0 0.0
    %1869 = vmatpush.msra.mxu0 0.0
    %1870 = vmatpush.msra.mxu0 0.0
    %1871 = vmatpush.msra.mxu0 0.0
    %1872 = vmatpush.msra.mxu0 0.0
    %1873 = vmatpush.msra.mxu0 0.0
    %1874 = vmatpush.msra.mxu0 0.0
    %1875 = vmatpush.msra.mxu0 0.0
    %1876 = vmatpush.msra.mxu0 0.0
    %1877 = vmatpush.msra.mxu0 %v906
    %1878 = vmatmul.f32.gmra.mxu0 %v1860
    %v1879 = vpop.f32.mrf.mxu0
    %v1880 = vadd.f32 0.0, %v1879
    %1881 = vdwg.mxu0
    %v1883 = vsel %vm1590, %v1756, 0
    %1885 = vmatpush.msra.mxu0 0.0
    %1886 = vmatpush.msra.mxu0 0.0
    %1887 = vmatpush.msra.mxu0 0.0
    %1888 = vmatpush.msra.mxu0 0.0
    %1889 = vmatpush.msra.mxu0 0.0
    %1890 = vmatpush.msra.mxu0 0.0
    %1891 = vmatpush.msra.mxu0 0.0
    %1892 = vmatpush.msra.mxu0 0.0
    %1893 = vmatpush.msra.mxu0 0.0
    %1894 = vmatpush.msra.mxu0 0.0
    %1895 = vmatpush.msra.mxu0 0.0
    %1896 = vmatpush.msra.mxu0 0.0
    %1897 = vmatpush.msra.mxu0 0.0
    %1898 = vmatpush.msra.mxu0 0.0
    %1899 = vmatpush.msra.mxu0 0.0
    %1900 = vmatpush.msra.mxu0 %v929
    %1901 = vmatmul.f32.gmra.mxu0 %v1883
    %v1902 = vpop.f32.mrf.mxu0
    %v1903 = vadd.f32 0.0, %v1902
    %1904 = vdwg.mxu0
    %v1906 = vsel %vm1590, %v1757, 0
    %1908 = vmatpush.msra.mxu0 0.0
    %1909 = vmatpush.msra.mxu0 0.0
    %1910 = vmatpush.msra.mxu0 0.0
    %1911 = vmatpush.msra.mxu0 0.0
    %1912 = vmatpush.msra.mxu0 0.0
    %1913 = vmatpush.msra.mxu0 0.0
    %1914 = vmatpush.msra.mxu0 0.0
    %1915 = vmatpush.msra.mxu0 0.0
    %1916 = vmatpush.msra.mxu0 0.0
    %1917 = vmatpush.msra.mxu0 0.0
    %1918 = vmatpush.msra.mxu0 0.0
    %1919 = vmatpush.msra.mxu0 0.0
    %1920 = vmatpush.msra.mxu0 0.0
    %1921 = vmatpush.msra.mxu0 0.0
    %1922 = vmatpush.msra.mxu0 0.0
    %1923 = vmatpush.msra.mxu0 %v952
    %1924 = vmatmul.f32.gmra.mxu0 %v1906
    %v1925 = vpop.f32.mrf.mxu0
    %v1926 = vadd.f32 0.0, %v1925
    %1927 = vdwg.mxu0
    %v1929 = vsel %vm1590, %v1758, 0
    %1931 = vmatpush.msra.mxu0 0.0
    %1932 = vmatpush.msra.mxu0 0.0
    %1933 = vmatpush.msra.mxu0 0.0
    %1934 = vmatpush.msra.mxu0 0.0
    %1935 = vmatpush.msra.mxu0 0.0
    %1936 = vmatpush.msra.mxu0 0.0
    %1937 = vmatpush.msra.mxu0 0.0
    %1938 = vmatpush.msra.mxu0 0.0
    %1939 = vmatpush.msra.mxu0 0.0
    %1940 = vmatpush.msra.mxu0 0.0
    %1941 = vmatpush.msra.mxu0 0.0
    %1942 = vmatpush.msra.mxu0 0.0
    %1943 = vmatpush.msra.mxu0 0.0
    %1944 = vmatpush.msra.mxu0 0.0
    %1945 = vmatpush.msra.mxu0 0.0
    %1946 = vmatpush.msra.mxu0 %v975
    %1947 = vmatmul.f32.gmra.mxu0 %v1929
    %v1948 = vpop.f32.mrf.mxu0
    %v1949 = vadd.f32 0.0, %v1948
    %1950 = vdwg.mxu0
    %v1952 = vsel %vm1590, %v1759, 0
    %1954 = vmatpush.msra.mxu0 0.0
    %1955 = vmatpush.msra.mxu0 0.0
    %1956 = vmatpush.msra.mxu0 0.0
    %1957 = vmatpush.msra.mxu0 0.0
    %1958 = vmatpush.msra.mxu0 0.0
    %1959 = vmatpush.msra.mxu0 0.0
    %1960 = vmatpush.msra.mxu0 0.0
    %1961 = vmatpush.msra.mxu0 0.0
    %1962 = vmatpush.msra.mxu0 0.0
    %1963 = vmatpush.msra.mxu0 0.0
    %1964 = vmatpush.msra.mxu0 0.0
    %1965 = vmatpush.msra.mxu0 0.0
    %1966 = vmatpush.msra.mxu0 0.0
    %1967 = vmatpush.msra.mxu0 0.0
    %1968 = vmatpush.msra.mxu0 0.0
    %1969 = vmatpush.msra.mxu0 %v995
    %1970 = vmatmul.f32.gmra.mxu0 %v1952
    %v1971 = vpop.f32.mrf.mxu0
    %v1972 = vadd.f32 0.0, %v1971
    %1973 = vdwg.mxu0
    %v1975 = vsel %vm1590, %v1760, 0
    %1977 = vmatpush.msra.mxu0 0.0
    %1978 = vmatpush.msra.mxu0 0.0
    %1979 = vmatpush.msra.mxu0 0.0
    %1980 = vmatpush.msra.mxu0 0.0
    %1981 = vmatpush.msra.mxu0 0.0
    %1982 = vmatpush.msra.mxu0 0.0
    %1983 = vmatpush.msra.mxu0 0.0
    %1984 = vmatpush.msra.mxu0 0.0
    %1985 = vmatpush.msra.mxu0 0.0
    %1986 = vmatpush.msra.mxu0 0.0
    %1987 = vmatpush.msra.mxu0 0.0
    %1988 = vmatpush.msra.mxu0 0.0
    %1989 = vmatpush.msra.mxu0 0.0
    %1990 = vmatpush.msra.mxu0 0.0
    %1991 = vmatpush.msra.mxu0 0.0
    %1992 = vmatpush.msra.mxu0 %v1015
    %1993 = vmatmul.f32.gmra.mxu0 %v1975
    %v1994 = vpop.f32.mrf.mxu0
    %v1995 = vadd.f32 0.0, %v1994
    %1996 = vdwg.mxu0
    %v1998 = vsel %vm1590, %v1761, 0
    %2000 = vmatpush.msra.mxu0 0.0
    %2001 = vmatpush.msra.mxu0 0.0
    %2002 = vmatpush.msra.mxu0 0.0
    %2003 = vmatpush.msra.mxu0 0.0
    %2004 = vmatpush.msra.mxu0 0.0
    %2005 = vmatpush.msra.mxu0 0.0
    %2006 = vmatpush.msra.mxu0 0.0
    %2007 = vmatpush.msra.mxu0 0.0
    %2008 = vmatpush.msra.mxu0 0.0
    %2009 = vmatpush.msra.mxu0 0.0
    %2010 = vmatpush.msra.mxu0 0.0
    %2011 = vmatpush.msra.mxu0 0.0
    %2012 = vmatpush.msra.mxu0 0.0
    %2013 = vmatpush.msra.mxu0 0.0
    %2014 = vmatpush.msra.mxu0 0.0
    %2015 = vmatpush.msra.mxu0 %v1035
    %2016 = vmatmul.f32.gmra.mxu0 %v1998
    %v2017 = vpop.f32.mrf.mxu0
    %v2018 = vadd.f32 0.0, %v2017
    %2019 = vdwg.mxu0
    %v2021 = vsel %vm1590, %v1762, 0
    %2023 = vmatpush.msra.mxu0 0.0
    %2024 = vmatpush.msra.mxu0 0.0
    %2025 = vmatpush.msra.mxu0 0.0
    %2026 = vmatpush.msra.mxu0 0.0
    %2027 = vmatpush.msra.mxu0 0.0
    %2028 = vmatpush.msra.mxu0 0.0
    %2029 = vmatpush.msra.mxu0 0.0
    %2030 = vmatpush.msra.mxu0 0.0
    %2031 = vmatpush.msra.mxu0 0.0
    %2032 = vmatpush.msra.mxu0 0.0
    %2033 = vmatpush.msra.mxu0 0.0
    %2034 = vmatpush.msra.mxu0 0.0
    %2035 = vmatpush.msra.mxu0 0.0
    %2036 = vmatpush.msra.mxu0 0.0
    %2037 = vmatpush.msra.mxu0 0.0
    %2038 = vmatpush.msra.mxu0 %v1055
    %2039 = vmatmul.f32.gmra.mxu0 %v2021
    %v2040 = vpop.f32.mrf.mxu0
    %v2041 = vadd.f32 0.0, %v2040
    %2042 = vdwg.mxu0
    %v2044 = vsel %vm1590, %v1763, 0
    %2046 = vmatpush.msra.mxu0 0.0
    %2047 = vmatpush.msra.mxu0 0.0
    %2048 = vmatpush.msra.mxu0 0.0
    %2049 = vmatpush.msra.mxu0 0.0
    %2050 = vmatpush.msra.mxu0 0.0
    %2051 = vmatpush.msra.mxu0 0.0
    %2052 = vmatpush.msra.mxu0 0.0
    %2053 = vmatpush.msra.mxu0 0.0
    %2054 = vmatpush.msra.mxu0 0.0
    %2055 = vmatpush.msra.mxu0 0.0
    %2056 = vmatpush.msra.mxu0 0.0
    %2057 = vmatpush.msra.mxu0 0.0
    %2058 = vmatpush.msra.mxu0 0.0
    %2059 = vmatpush.msra.mxu0 0.0
    %2060 = vmatpush.msra.mxu0 0.0
    %2061 = vmatpush.msra.mxu0 %v1075
    %2062 = vmatmul.f32.gmra.mxu0 %v2044
    %v2063 = vpop.f32.mrf.mxu0
    %v2064 = vadd.f32 0.0, %v2063
    %2065 = vdwg.mxu0
    %v2067 = vsel %vm1590, %v1764, 0
    %2069 = vmatpush.msra.mxu0 0.0
    %2070 = vmatpush.msra.mxu0 0.0
    %2071 = vmatpush.msra.mxu0 0.0
    %2072 = vmatpush.msra.mxu0 0.0
    %2073 = vmatpush.msra.mxu0 0.0
    %2074 = vmatpush.msra.mxu0 0.0
    %2075 = vmatpush.msra.mxu0 0.0
    %2076 = vmatpush.msra.mxu0 0.0
    %2077 = vmatpush.msra.mxu0 0.0
    %2078 = vmatpush.msra.mxu0 0.0
    %2079 = vmatpush.msra.mxu0 0.0
    %2080 = vmatpush.msra.mxu0 0.0
    %2081 = vmatpush.msra.mxu0 0.0
    %2082 = vmatpush.msra.mxu0 0.0
    %2083 = vmatpush.msra.mxu0 0.0
    %2084 = vmatpush.msra.mxu0 %v1095
    %2085 = vmatmul.f32.gmra.mxu0 %v2067
    %v2086 = vpop.f32.mrf.mxu0
    %v2087 = vadd.f32 0.0, %v2086
    %2088 = vdwg.mxu0
    %v2090 = vsel %vm1590, %v1765, 0
    %2092 = vmatpush.msra.mxu0 0.0
    %2093 = vmatpush.msra.mxu0 0.0
    %2094 = vmatpush.msra.mxu0 0.0
    %2095 = vmatpush.msra.mxu0 0.0
    %2096 = vmatpush.msra.mxu0 0.0
    %2097 = vmatpush.msra.mxu0 0.0
    %2098 = vmatpush.msra.mxu0 0.0
    %2099 = vmatpush.msra.mxu0 0.0
    %2100 = vmatpush.msra.mxu0 0.0
    %2101 = vmatpush.msra.mxu0 0.0
    %2102 = vmatpush.msra.mxu0 0.0
    %2103 = vmatpush.msra.mxu0 0.0
    %2104 = vmatpush.msra.mxu0 0.0
    %2105 = vmatpush.msra.mxu0 0.0
    %2106 = vmatpush.msra.mxu0 0.0
    %2107 = vmatpush.msra.mxu0 %v1115
    %2108 = vmatmul.f32.gmra.mxu0 %v2090
    %v2109 = vpop.f32.mrf.mxu0
    %v2110 = vadd.f32 0.0, %v2109
    %2111 = vdwg.mxu0
    %v2113 = vsel %vm1590, %v1766, 0
    %2115 = vmatpush.msra.mxu0 0.0
    %2116 = vmatpush.msra.mxu0 0.0
    %2117 = vmatpush.msra.mxu0 0.0
    %2118 = vmatpush.msra.mxu0 0.0
    %2119 = vmatpush.msra.mxu0 0.0
    %2120 = vmatpush.msra.mxu0 0.0
    %2121 = vmatpush.msra.mxu0 0.0
    %2122 = vmatpush.msra.mxu0 0.0
    %2123 = vmatpush.msra.mxu0 0.0
    %2124 = vmatpush.msra.mxu0 0.0
    %2125 = vmatpush.msra.mxu0 0.0
    %2126 = vmatpush.msra.mxu0 0.0
    %2127 = vmatpush.msra.mxu0 0.0
    %2128 = vmatpush.msra.mxu0 0.0
    %2129 = vmatpush.msra.mxu0 0.0
    %2130 = vmatpush.msra.mxu0 %v1135
    %2131 = vmatmul.f32.gmra.mxu0 %v2113
    %v2132 = vpop.f32.mrf.mxu0
    %v2133 = vadd.f32 0.0, %v2132
    %2134 = vdwg.mxu0
    %v2135 = vld [vmem:[%s5] sm:$0xf]
    %v2136 = vld [vmem:[%s5 + $0x4] sm:$0xf]
    %v2137 = vld [vmem:[%s5 + $0x8] sm:$0xf]
    %v2138 = vld [vmem:[%s5 + $0xc] sm:$0xf]
    %v2139 = vld [vmem:[%s5 + $0x10] sm:$0xf]
    %v2140 = vld [vmem:[%s5 + $0x14] sm:$0xf]
    %v2141 = vld [vmem:[%s5 + $0x18] sm:$0xf]
    %v2142 = vld [vmem:[%s5 + $0x1c] sm:$0xf]
    %v2144 = vsel %vm1137, %v1788, 0
    %vm2146 = vcmask 1043456
    %v2148 = vsel %vm2146, %v2135, 0
    %2150 = vmatpush.msra.mxu0 0.0
    %2151 = vmatpush.msra.mxu0 0.0
    %2152 = vmatpush.msra.mxu0 0.0
    %2153 = vmatpush.msra.mxu0 0.0
    %2154 = vmatpush.msra.mxu0 0.0
    %2155 = vmatpush.msra.mxu0 0.0
    %2156 = vmatpush.msra.mxu0 0.0
    %2157 = vmatpush.msra.mxu0 0.0
    %2158 = vmatpush.msra.mxu0 0.0
    %2159 = vmatpush.msra.mxu0 0.0
    %2160 = vmatpush.msra.mxu0 0.0
    %2161 = vmatpush.msra.mxu0 0.0
    %2162 = vmatpush.msra.mxu0 0.0
    %2163 = vmatpush.msra.mxu0 0.0
    %2164 = vmatpush.msra.mxu0 0.0
    %2165 = vmatpush.msra.mxu0 %v2148
    %2166 = vmatmul.f32.gmra.mxu0 %v2144
    %v2167 = vpop.f32.mrf.mxu0
    %v2168 = vadd.f32 0.0, %v2167
    %2169 = vdwg.mxu0
    %v2171 = vsel %vm1137, %v1811, 0
    %v2174 = vsel %vm2146, %v2136, 0
    %2176 = vmatpush.msra.mxu0 0.0
    %2177 = vmatpush.msra.mxu0 0.0
    %2178 = vmatpush.msra.mxu0 0.0
    %2179 = vmatpush.msra.mxu0 0.0
    %2180 = vmatpush.msra.mxu0 0.0
    %2181 = vmatpush.msra.mxu0 0.0
    %2182 = vmatpush.msra.mxu0 0.0
    %2183 = vmatpush.msra.mxu0 0.0
    %2184 = vmatpush.msra.mxu0 0.0
    %2185 = vmatpush.msra.mxu0 0.0
    %2186 = vmatpush.msra.mxu0 0.0
    %2187 = vmatpush.msra.mxu0 0.0
    %2188 = vmatpush.msra.mxu0 0.0
    %2189 = vmatpush.msra.mxu0 0.0
    %2190 = vmatpush.msra.mxu0 0.0
    %2191 = vmatpush.msra.mxu0 %v2174
    %2192 = vmatmul.f32.gmra.mxu0 %v2171
    %v2193 = vpop.f32.mrf.mxu0
    %v2194 = vadd.f32 0.0, %v2193
    %2195 = vdwg.mxu0
    %v2197 = vsel %vm1137, %v1834, 0
    %v2200 = vsel %vm2146, %v2137, 0
    %2202 = vmatpush.msra.mxu0 0.0
    %2203 = vmatpush.msra.mxu0 0.0
    %2204 = vmatpush.msra.mxu0 0.0
    %2205 = vmatpush.msra.mxu0 0.0
    %2206 = vmatpush.msra.mxu0 0.0
    %2207 = vmatpush.msra.mxu0 0.0
    %2208 = vmatpush.msra.mxu0 0.0
    %2209 = vmatpush.msra.mxu0 0.0
    %2210 = vmatpush.msra.mxu0 0.0
    %2211 = vmatpush.msra.mxu0 0.0
    %2212 = vmatpush.msra.mxu0 0.0
    %2213 = vmatpush.msra.mxu0 0.0
    %2214 = vmatpush.msra.mxu0 0.0
    %2215 = vmatpush.msra.mxu0 0.0
    %2216 = vmatpush.msra.mxu0 0.0
    %2217 = vmatpush.msra.mxu0 %v2200
    %2218 = vmatmul.f32.gmra.mxu0 %v2197
    %v2219 = vpop.f32.mrf.mxu0
    %v2220 = vadd.f32 0.0, %v2219
    %2221 = vdwg.mxu0
    %v2223 = vsel %vm1137, %v1857, 0
    %v2226 = vsel %vm2146, %v2138, 0
    %2228 = vmatpush.msra.mxu0 0.0
    %2229 = vmatpush.msra.mxu0 0.0
    %2230 = vmatpush.msra.mxu0 0.0
    %2231 = vmatpush.msra.mxu0 0.0
    %2232 = vmatpush.msra.mxu0 0.0
    %2233 = vmatpush.msra.mxu0 0.0
    %2234 = vmatpush.msra.mxu0 0.0
    %2235 = vmatpush.msra.mxu0 0.0
    %2236 = vmatpush.msra.mxu0 0.0
    %2237 = vmatpush.msra.mxu0 0.0
    %2238 = vmatpush.msra.mxu0 0.0
    %2239 = vmatpush.msra.mxu0 0.0
    %2240 = vmatpush.msra.mxu0 0.0
    %2241 = vmatpush.msra.mxu0 0.0
    %2242 = vmatpush.msra.mxu0 0.0
    %2243 = vmatpush.msra.mxu0 %v2226
    %2244 = vmatmul.f32.gmra.mxu0 %v2223
    %v2245 = vpop.f32.mrf.mxu0
    %v2246 = vadd.f32 0.0, %v2245
    %2247 = vdwg.mxu0
    %v2249 = vsel %vm1137, %v1880, 0
    %v2252 = vsel %vm2146, %v2139, 0
    %2254 = vmatpush.msra.mxu0 0.0
    %2255 = vmatpush.msra.mxu0 0.0
    %2256 = vmatpush.msra.mxu0 0.0
    %2257 = vmatpush.msra.mxu0 0.0
    %2258 = vmatpush.msra.mxu0 0.0
    %2259 = vmatpush.msra.mxu0 0.0
    %2260 = vmatpush.msra.mxu0 0.0
    %2261 = vmatpush.msra.mxu0 0.0
    %2262 = vmatpush.msra.mxu0 0.0
    %2263 = vmatpush.msra.mxu0 0.0
    %2264 = vmatpush.msra.mxu0 0.0
    %2265 = vmatpush.msra.mxu0 0.0
    %2266 = vmatpush.msra.mxu0 0.0
    %2267 = vmatpush.msra.mxu0 0.0
    %2268 = vmatpush.msra.mxu0 0.0
    %2269 = vmatpush.msra.mxu0 %v2252
    %2270 = vmatmul.f32.gmra.mxu0 %v2249
    %v2271 = vpop.f32.mrf.mxu0
    %v2272 = vadd.f32 0.0, %v2271
    %2273 = vdwg.mxu0
    %v2275 = vsel %vm1137, %v1903, 0
    %v2278 = vsel %vm2146, %v2140, 0
    %2280 = vmatpush.msra.mxu0 0.0
    %2281 = vmatpush.msra.mxu0 0.0
    %2282 = vmatpush.msra.mxu0 0.0
    %2283 = vmatpush.msra.mxu0 0.0
    %2284 = vmatpush.msra.mxu0 0.0
    %2285 = vmatpush.msra.mxu0 0.0
    %2286 = vmatpush.msra.mxu0 0.0
    %2287 = vmatpush.msra.mxu0 0.0
    %2288 = vmatpush.msra.mxu0 0.0
    %2289 = vmatpush.msra.mxu0 0.0
    %2290 = vmatpush.msra.mxu0 0.0
    %2291 = vmatpush.msra.mxu0 0.0
    %2292 = vmatpush.msra.mxu0 0.0
    %2293 = vmatpush.msra.mxu0 0.0
    %2294 = vmatpush.msra.mxu0 0.0
    %2295 = vmatpush.msra.mxu0 %v2278
    %2296 = vmatmul.f32.gmra.mxu0 %v2275
    %v2297 = vpop.f32.mrf.mxu0
    %v2298 = vadd.f32 0.0, %v2297
    %2299 = vdwg.mxu0
    %v2301 = vsel %vm1137, %v1926, 0
    %v2304 = vsel %vm2146, %v2141, 0
    %2306 = vmatpush.msra.mxu0 0.0
    %2307 = vmatpush.msra.mxu0 0.0
    %2308 = vmatpush.msra.mxu0 0.0
    %2309 = vmatpush.msra.mxu0 0.0
    %2310 = vmatpush.msra.mxu0 0.0
    %2311 = vmatpush.msra.mxu0 0.0
    %2312 = vmatpush.msra.mxu0 0.0
    %2313 = vmatpush.msra.mxu0 0.0
    %2314 = vmatpush.msra.mxu0 0.0
    %2315 = vmatpush.msra.mxu0 0.0
    %2316 = vmatpush.msra.mxu0 0.0
    %2317 = vmatpush.msra.mxu0 0.0
    %2318 = vmatpush.msra.mxu0 0.0
    %2319 = vmatpush.msra.mxu0 0.0
    %2320 = vmatpush.msra.mxu0 0.0
    %2321 = vmatpush.msra.mxu0 %v2304
    %2322 = vmatmul.f32.gmra.mxu0 %v2301
    %v2323 = vpop.f32.mrf.mxu0
    %v2324 = vadd.f32 0.0, %v2323
    %2325 = vdwg.mxu0
    %v2327 = vsel %vm1137, %v1949, 0
    %v2330 = vsel %vm2146, %v2142, 0
    %2332 = vmatpush.msra.mxu0 0.0
    %2333 = vmatpush.msra.mxu0 0.0
    %2334 = vmatpush.msra.mxu0 0.0
    %2335 = vmatpush.msra.mxu0 0.0
    %2336 = vmatpush.msra.mxu0 0.0
    %2337 = vmatpush.msra.mxu0 0.0
    %2338 = vmatpush.msra.mxu0 0.0
    %2339 = vmatpush.msra.mxu0 0.0
    %2340 = vmatpush.msra.mxu0 0.0
    %2341 = vmatpush.msra.mxu0 0.0
    %2342 = vmatpush.msra.mxu0 0.0
    %2343 = vmatpush.msra.mxu0 0.0
    %2344 = vmatpush.msra.mxu0 0.0
    %2345 = vmatpush.msra.mxu0 0.0
    %2346 = vmatpush.msra.mxu0 0.0
    %2347 = vmatpush.msra.mxu0 %v2330
    %2348 = vmatmul.f32.gmra.mxu0 %v2327
    %v2349 = vpop.f32.mrf.mxu0
    %v2350 = vadd.f32 0.0, %v2349
    %2351 = vdwg.mxu0
    %v2353 = vsel %vm1137, %v1972, 0
    %2355 = vmatpush.msra.mxu0 0.0
    %2356 = vmatpush.msra.mxu0 0.0
    %2357 = vmatpush.msra.mxu0 0.0
    %2358 = vmatpush.msra.mxu0 0.0
    %2359 = vmatpush.msra.mxu0 0.0
    %2360 = vmatpush.msra.mxu0 0.0
    %2361 = vmatpush.msra.mxu0 0.0
    %2362 = vmatpush.msra.mxu0 0.0
    %2363 = vmatpush.msra.mxu0 0.0
    %2364 = vmatpush.msra.mxu0 0.0
    %2365 = vmatpush.msra.mxu0 0.0
    %2366 = vmatpush.msra.mxu0 0.0
    %2367 = vmatpush.msra.mxu0 0.0
    %2368 = vmatpush.msra.mxu0 0.0
    %2369 = vmatpush.msra.mxu0 0.0
    %2370 = vmatpush.msra.mxu0 %v2148
    %2371 = vmatmul.f32.gmra.mxu0 %v2353
    %v2372 = vpop.f32.mrf.mxu0
    %v2373 = vadd.f32 0.0, %v2372
    %2374 = vdwg.mxu0
    %v2376 = vsel %vm1137, %v1995, 0
    %2378 = vmatpush.msra.mxu0 0.0
    %2379 = vmatpush.msra.mxu0 0.0
    %2380 = vmatpush.msra.mxu0 0.0
    %2381 = vmatpush.msra.mxu0 0.0
    %2382 = vmatpush.msra.mxu0 0.0
    %2383 = vmatpush.msra.mxu0 0.0
    %2384 = vmatpush.msra.mxu0 0.0
    %2385 = vmatpush.msra.mxu0 0.0
    %2386 = vmatpush.msra.mxu0 0.0
    %2387 = vmatpush.msra.mxu0 0.0
    %2388 = vmatpush.msra.mxu0 0.0
    %2389 = vmatpush.msra.mxu0 0.0
    %2390 = vmatpush.msra.mxu0 0.0
    %2391 = vmatpush.msra.mxu0 0.0
    %2392 = vmatpush.msra.mxu0 0.0
    %2393 = vmatpush.msra.mxu0 %v2174
    %2394 = vmatmul.f32.gmra.mxu0 %v2376
    %v2395 = vpop.f32.mrf.mxu0
    %v2396 = vadd.f32 0.0, %v2395
    %2397 = vdwg.mxu0
    %v2399 = vsel %vm1137, %v2018, 0
    %2401 = vmatpush.msra.mxu0 0.0
    %2402 = vmatpush.msra.mxu0 0.0
    %2403 = vmatpush.msra.mxu0 0.0
    %2404 = vmatpush.msra.mxu0 0.0
    %2405 = vmatpush.msra.mxu0 0.0
    %2406 = vmatpush.msra.mxu0 0.0
    %2407 = vmatpush.msra.mxu0 0.0
    %2408 = vmatpush.msra.mxu0 0.0
    %2409 = vmatpush.msra.mxu0 0.0
    %2410 = vmatpush.msra.mxu0 0.0
    %2411 = vmatpush.msra.mxu0 0.0
    %2412 = vmatpush.msra.mxu0 0.0
    %2413 = vmatpush.msra.mxu0 0.0
    %2414 = vmatpush.msra.mxu0 0.0
    %2415 = vmatpush.msra.mxu0 0.0
    %2416 = vmatpush.msra.mxu0 %v2200
    %2417 = vmatmul.f32.gmra.mxu0 %v2399
    %v2418 = vpop.f32.mrf.mxu0
    %v2419 = vadd.f32 0.0, %v2418
    %2420 = vdwg.mxu0
    %v2422 = vsel %vm1137, %v2041, 0
    %2424 = vmatpush.msra.mxu0 0.0
    %2425 = vmatpush.msra.mxu0 0.0
    %2426 = vmatpush.msra.mxu0 0.0
    %2427 = vmatpush.msra.mxu0 0.0
    %2428 = vmatpush.msra.mxu0 0.0
    %2429 = vmatpush.msra.mxu0 0.0
    %2430 = vmatpush.msra.mxu0 0.0
    %2431 = vmatpush.msra.mxu0 0.0
    %2432 = vmatpush.msra.mxu0 0.0
    %2433 = vmatpush.msra.mxu0 0.0
    %2434 = vmatpush.msra.mxu0 0.0
    %2435 = vmatpush.msra.mxu0 0.0
    %2436 = vmatpush.msra.mxu0 0.0
    %2437 = vmatpush.msra.mxu0 0.0
    %2438 = vmatpush.msra.mxu0 0.0
    %2439 = vmatpush.msra.mxu0 %v2226
    %2440 = vmatmul.f32.gmra.mxu0 %v2422
    %v2441 = vpop.f32.mrf.mxu0
    %v2442 = vadd.f32 0.0, %v2441
    %2443 = vdwg.mxu0
    %v2445 = vsel %vm1137, %v2064, 0
    %2447 = vmatpush.msra.mxu0 0.0
    %2448 = vmatpush.msra.mxu0 0.0
    %2449 = vmatpush.msra.mxu0 0.0
    %2450 = vmatpush.msra.mxu0 0.0
    %2451 = vmatpush.msra.mxu0 0.0
    %2452 = vmatpush.msra.mxu0 0.0
    %2453 = vmatpush.msra.mxu0 0.0
    %2454 = vmatpush.msra.mxu0 0.0
    %2455 = vmatpush.msra.mxu0 0.0
    %2456 = vmatpush.msra.mxu0 0.0
    %2457 = vmatpush.msra.mxu0 0.0
    %2458 = vmatpush.msra.mxu0 0.0
    %2459 = vmatpush.msra.mxu0 0.0
    %2460 = vmatpush.msra.mxu0 0.0
    %2461 = vmatpush.msra.mxu0 0.0
    %2462 = vmatpush.msra.mxu0 %v2252
    %2463 = vmatmul.f32.gmra.mxu0 %v2445
    %v2464 = vpop.f32.mrf.mxu0
    %v2465 = vadd.f32 0.0, %v2464
    %2466 = vdwg.mxu0
    %v2468 = vsel %vm1137, %v2087, 0
    %2470 = vmatpush.msra.mxu0 0.0
    %2471 = vmatpush.msra.mxu0 0.0
    %2472 = vmatpush.msra.mxu0 0.0
    %2473 = vmatpush.msra.mxu0 0.0
    %2474 = vmatpush.msra.mxu0 0.0
    %2475 = vmatpush.msra.mxu0 0.0
    %2476 = vmatpush.msra.mxu0 0.0
    %2477 = vmatpush.msra.mxu0 0.0
    %2478 = vmatpush.msra.mxu0 0.0
    %2479 = vmatpush.msra.mxu0 0.0
    %2480 = vmatpush.msra.mxu0 0.0
    %2481 = vmatpush.msra.mxu0 0.0
    %2482 = vmatpush.msra.mxu0 0.0
    %2483 = vmatpush.msra.mxu0 0.0
    %2484 = vmatpush.msra.mxu0 0.0
    %2485 = vmatpush.msra.mxu0 %v2278
    %2486 = vmatmul.f32.gmra.mxu0 %v2468
    %v2487 = vpop.f32.mrf.mxu0
    %v2488 = vadd.f32 0.0, %v2487
    %2489 = vdwg.mxu0
    %v2491 = vsel %vm1137, %v2110, 0
    %2493 = vmatpush.msra.mxu0 0.0
    %2494 = vmatpush.msra.mxu0 0.0
    %2495 = vmatpush.msra.mxu0 0.0
    %2496 = vmatpush.msra.mxu0 0.0
    %2497 = vmatpush.msra.mxu0 0.0
    %2498 = vmatpush.msra.mxu0 0.0
    %2499 = vmatpush.msra.mxu0 0.0
    %2500 = vmatpush.msra.mxu0 0.0
    %2501 = vmatpush.msra.mxu0 0.0
    %2502 = vmatpush.msra.mxu0 0.0
    %2503 = vmatpush.msra.mxu0 0.0
    %2504 = vmatpush.msra.mxu0 0.0
    %2505 = vmatpush.msra.mxu0 0.0
    %2506 = vmatpush.msra.mxu0 0.0
    %2507 = vmatpush.msra.mxu0 0.0
    %2508 = vmatpush.msra.mxu0 %v2304
    %2509 = vmatmul.f32.gmra.mxu0 %v2491
    %v2510 = vpop.f32.mrf.mxu0
    %v2511 = vadd.f32 0.0, %v2510
    %2512 = vdwg.mxu0
    %v2514 = vsel %vm1137, %v2133, 0
    %2516 = vmatpush.msra.mxu0 0.0
    %2517 = vmatpush.msra.mxu0 0.0
    %2518 = vmatpush.msra.mxu0 0.0
    %2519 = vmatpush.msra.mxu0 0.0
    %2520 = vmatpush.msra.mxu0 0.0
    %2521 = vmatpush.msra.mxu0 0.0
    %2522 = vmatpush.msra.mxu0 0.0
    %2523 = vmatpush.msra.mxu0 0.0
    %2524 = vmatpush.msra.mxu0 0.0
    %2525 = vmatpush.msra.mxu0 0.0
    %2526 = vmatpush.msra.mxu0 0.0
    %2527 = vmatpush.msra.mxu0 0.0
    %2528 = vmatpush.msra.mxu0 0.0
    %2529 = vmatpush.msra.mxu0 0.0
    %2530 = vmatpush.msra.mxu0 0.0
    %2531 = vmatpush.msra.mxu0 %v2330
    %2532 = vmatmul.f32.gmra.mxu0 %v2514
    %v2533 = vpop.f32.mrf.mxu0
    %v2534 = vadd.f32 0.0, %v2533
    %2535 = vdwg.mxu0
    %v2536 = vsel %vm82, %v2168, 0.0
    %v2537 = vsel %vm82, %v2194, 0.0
    %v2538 = vadd.f32 %v2536, %v2537
    %v2539 = vsel %vm82, %v2220, 0.0
    %v2540 = vadd.f32 %v2538, %v2539
    %v2541 = vsel %vm82, %v2246, 0.0
    %v2542 = vadd.f32 %v2540, %v2541
    %v2543 = vsel %vm82, %v2272, 0.0
    %v2544 = vadd.f32 %v2542, %v2543
    %v2545 = vsel %vm82, %v2298, 0.0
    %v2546 = vadd.f32 %v2544, %v2545
    %v2547 = vsel %vm82, %v2324, 0.0
    %v2548 = vadd.f32 %v2546, %v2547
    %v2549 = vsel %vm82, %v2350, 0.0
    %v2550 = vadd.f32 %v2548, %v2549
    %v2551 = vsel %vm82, %v2373, 0.0
    %v2552 = vsel %vm82, %v2396, 0.0
    %v2553 = vadd.f32 %v2551, %v2552
    %v2554 = vsel %vm82, %v2419, 0.0
    %v2555 = vadd.f32 %v2553, %v2554
    %v2556 = vsel %vm82, %v2442, 0.0
    %v2557 = vadd.f32 %v2555, %v2556
    %v2558 = vsel %vm82, %v2465, 0.0
    %v2559 = vadd.f32 %v2557, %v2558
    %v2560 = vsel %vm82, %v2488, 0.0
    %v2561 = vadd.f32 %v2559, %v2560
    %v2562 = vsel %vm82, %v2511, 0.0
    %v2563 = vadd.f32 %v2561, %v2562
    %v2564 = vsel %vm82, %v2534, 0.0
    %v2565 = vadd.f32 %v2563, %v2564
    %v2566 = vld [vmem:[%s6] sm:$0x1]
    %v2568 = vperm.slane %v2566, 0
    %v2570 = vadd.f32 %v2550, %v2568
    %v2571 = vadd.f32 %v2565, %v2568
    %2572 = vst.msk [vmem:[#allocation8] sm:$0xff] %vm82, %v2570
    %2573 = vst.msk [vmem:[#allocation8 + $0x8] sm:$0xff] %vm82, %v2571
    // Predicated region
    $region42: #{self_attention_for_large.1} parent=1 // pred_check
      _
    $region43: #{self_attention_for_large.1} parent=1 // pred_check_branch
      %2575 = sbr.rel (0) target = $region45
    $region44: #{self_attention_for_large.1} parent=1 // pred_region
      %2577 = vsyncadd [#allocation4], 0
      %s2578 = sshll.u32 [#allocation8], 4
      %s2579 = int_to_ptr.vmem [resolvable:$true] %s2578
      %s2580 = sshll.u32 %s7, 4
      %s2581 = int_to_ptr.hbm [resolvable:$true] %s2580
      %2586 = dma.vmem_to_hbm [thread:$0]  %s2579, 256, %s2581, [#allocation4], 128, 128, 8
    $region45: #{self_attention_for_large.1} parent=1 // pred_fallthru
      _
    // Predicated region
    $region46: #{self_attention_for_large.1} parent=1 // pred_check
      _
    $region47: #{self_attention_for_large.1} parent=1 // pred_check_branch
      %2588 = sbr.rel (0) target = $region49
    $region48: #{self_attention_for_large.1} parent=1 // pred_region
      %2590 = dma.done [#allocation4], 256
    $region49: #{self_attention_for_large.1} parent=1 // pred_fallthru
      _
    %2591 = vsyncpa [#allocation3], 1
    %2592 = vsyncpa [#allocation6], 1
    %2593 = vsyncpa [#allocation4], 1

</llo_original>
